<compile_context>
chip_gen: v6e
topology: v6e:2x2x1
jax: 0.10.0
libtpu: 0.0.40
codegen_flags: <defaults>
</compile_context>

<pallas_src>
import functools

import numpy as np

import jax
import jax.numpy as jnp
from jax.experimental import pallas as pl
from jax.experimental.pallas import tpu as pltpu

# MXU operand dtype. bf16 halves VMEM/HBM traffic and gets full MXU rate on
# v6e/v7x (accumulation stays f32) but perturbs numerics vs the f32 reference.
COMPUTE_DTYPE = jnp.float32
IMAGES_PER_STEP = 8  # images concatenated along lanes per grid step


def _round_up(x, m):
    return ((x + m - 1) // m) * m


def _fused_cnn_kernel(x_ref, wh_ref, wo_ref, mask_ref, bias_ref, out_ref,
                      pad_ref, slab_ref, *,
                      n_layers, ksize, c_sub, halo, npix, wpad, compute_dtype):
    """Whole CNN for one batch-of-images grid step.

    Layout: channels-on-sublanes (padded to the sublane tile) x canvas-pixels-
    on-lanes, B image canvases of size Hp*Wp concatenated along lanes.
    x_ref / pad_ref carry a zero halo of `halo` lanes on both ends so every
    statically shifted window read stays in bounds and sees real zeros.
    """
    ph = pw = ksize // 2

    # Halo-only zeroing (center is fully overwritten before being read; rows
    # >= real channel count stay zero via zero weight rows). Done every step so
    # every TensorCore's private scratch is clean under the 'parallel' grid.
    pad_ref[:, 0:halo] = jnp.zeros((c_sub, halo), compute_dtype)
    pad_ref[:, halo + npix:halo + npix + halo] = jnp.zeros((c_sub, halo),
                                                           compute_dtype)

    def build_slab(src_ref):
        # im2col: stack the kk shifted [c_sub, npix] windows along sublanes.
        k = 0
        for dh in range(-ph, ph + 1):
            for dw in range(-pw, pw + 1):
                d = dh * wpad + dw
                slab_ref[k * c_sub:(k + 1) * c_sub, :] = \
                    src_ref[:, halo + d:halo + d + npix]
                k += 1

    cmask = mask_ref[...]  # [1, npix] canvas-interior mask (1=real pixel, 0=pad ring)
    src = x_ref
    act = None
    for layer in range(n_layers):
        build_slab(src)
        # ONE dense-K matmul per layer: [c_sub, kk*c_sub] @ [kk*c_sub, npix].
        acc = jnp.dot(wh_ref[layer], slab_ref[...],
                      preferred_element_type=jnp.float32)
        act = jnp.maximum(acc, 0.0)  # ReLU epilogue in f32
        # TODO(synk): nn.Dropout(0.2) is identity in eval/inference; training-mode
        # dropout is not implemented.
        if layer + 1 < n_layers:
            # Fused ReLU restage; the mask re-zeroes the padding ring so the next
            # conv sees proper 'same'-padding zeros (also kills cross-image leak).
            pad_ref[:, halo:halo + npix] = (act * cmask).astype(compute_dtype)
            src = pad_ref

    # Fused final 1x1 conv (Cout=1) + bias: [8, c_sub] @ [c_sub, npix], row 0 real.
    y = jnp.dot(wo_ref[...], act.astype(wo_ref.dtype),
                preferred_element_type=jnp.float32)
    out_ref[...] = (y[0:1, :] + bias_ref[0]).astype(out_ref.dtype)


@jax.jit
def cnn_forward(params, x_nchw):
    """Matches CNN.forward: (conv->ReLU->Dropout[eval=id]) * L, then 1x1 conv + bias."""
    n, cin, h, w = x_nchw.shape
    hidden_w = params["hidden_w"]
    n_layers = len(hidden_w)
    assert n_layers >= 1, "expects at least one hidden conv layer"
    ksize = hidden_w[0].shape[-1]
    assert ksize % 2 == 1, "same-padding conv assumed odd kernel (PyTorch padding=k//2)"
    ph = pw = ksize // 2
    kk = ksize * ksize
    hp, wpad = h + 2 * ph, w + 2 * pw
    p_canvas = hp * wpad

    sub_tile = 8 if COMPUTE_DTYPE == jnp.float32 else 16
    chans = [cin] + [wt.shape[0] for wt in hidden_w]
    c_sub = _round_up(max(chans), sub_tile)     # sublane-granular channel padding

    b_img = max(1, min(IMAGES_PER_STEP, n))
    steps = -(-n // b_img)
    n_total = steps * b_img
    npix = b_img * p_canvas                     # matmul N per grid step
    halo = ph * wpad + pw                       # max |shift| of a window read
    lx = halo + npix + halo

    # --- Stage input: per-image zero-padded canvas, images concatenated on lanes,
    #     channels padded to c_sub, zero halo on both lane ends.
    x = x_nchw.astype(jnp.float32)
    x = jnp.pad(x, ((0, n_total - n), (0, c_sub - cin), (ph, ph), (pw, pw)))
    x = x.reshape(steps, b_img, c_sub, p_canvas)
    x = jnp.transpose(x, (0, 2, 1, 3)).reshape(steps, c_sub, npix)
    x = jnp.pad(x, ((0, 0), (0, 0), (halo, halo))).astype(COMPUTE_DTYPE)

    # --- Hidden weights [Cout,Cin,K,K] -> im2col layout [L, c_sub, kk*c_sub]
    #     (columns ordered offset-major, channel-minor to match the slab).
    wstk = []
    for wt in hidden_w:
        cout_l, cin_l = wt.shape[0], wt.shape[1]
        wk = jnp.transpose(wt, (2, 3, 0, 1)).reshape(kk, cout_l, cin_l)
        wk = jnp.pad(wk, ((0, 0), (0, c_sub - cout_l), (0, c_sub - cin_l)))
        wk = jnp.transpose(wk, (1, 0, 2)).reshape(c_sub, kk * c_sub)
        wstk.append(wk)
    w_hidden = jnp.stack(wstk, axis=0).astype(COMPUTE_DTYPE)   # [L, c_sub, kk*c_sub]

    # Final 1x1 conv weight [1, Chid, 1, 1] -> [8, c_sub] (row 0 real) + scalar bias.
    chid = params["out_w"].shape[1]
    wo = params["out_w"].reshape(1, chid)
    wo = jnp.pad(wo, ((0, 7), (0, c_sub - chid))).astype(COMPUTE_DTYPE)
    bo = params["out_b"].reshape(1).astype(jnp.float32)

    # Canvas-interior mask [1, npix] (static numpy -> constant).
    hh = np.arange(p_canvas) // wpad
    ww = np.arange(p_canvas) % wpad
    valid = ((hh >= ph) & (hh < ph + h) & (ww >= pw) & (ww < pw + w))
    cmask = jnp.asarray(np.tile(valid.astype(np.float32), b_img)[None, :])

    kernel = functools.partial(
        _fused_cnn_kernel, n_layers=n_layers, ksize=ksize, c_sub=c_sub,
        halo=halo, npix=npix, wpad=wpad, compute_dtype=COMPUTE_DTYPE)

    out = pl.pallas_call(
        kernel,
        out_shape=jax.ShapeDtypeStruct((steps, 1, npix), jnp.float32),
        grid=(steps,),
        in_specs=[
            pl.BlockSpec((None, c_sub, lx), lambda i: (i, 0, 0)),              # image batch
            pl.BlockSpec((n_layers, c_sub, kk * c_sub), lambda i: (0, 0, 0)),  # resident weights
            pl.BlockSpec((8, c_sub), lambda i: (0, 0)),                        # resident 1x1 weight
            pl.BlockSpec((1, npix), lambda i: (0, 0)),                         # resident canvas mask
            pl.BlockSpec(memory_space=pltpu.MemorySpace.SMEM),                 # scalar output bias
        ],
        out_specs=pl.BlockSpec((None, 1, npix), lambda i: (i, 0, 0)),          # lane-dense output
        scratch_shapes=[
            pltpu.VMEM((c_sub, lx), COMPUTE_DTYPE),          # activation staging (with halo)
            pltpu.VMEM((kk * c_sub, npix), COMPUTE_DTYPE),   # im2col slab
        ],
        compiler_params=pltpu.CompilerParams(
            dimension_semantics=("parallel",),               # shard image-steps across TCs
            vmem_limit_bytes=32 * 1024 * 1024),
    )(x, w_hidden, wo, cmask, bo)

    # De-stage: (steps, 1, B*Hp*Wp) -> (n, 1, H, W) by cropping the canvas ring.
    out = out.reshape(steps * b_img, hp, wpad)[:n, ph:ph + h, pw:pw + w]
    return out[:, None, :, :]


def init_cnn_params(key, n_input_channels, n_hidden_layers, n_hidden_kernels,
                    kernel_size):
    """Deterministic synthetic init with PyTorch Conv2d weight shapes."""
    params = {"hidden_w": [], "out_w": None, "out_b": None}
    cin = n_input_channels
    for _ in range(n_hidden_layers):
        key, sub = jax.random.split(key)
        fan_in = cin * kernel_size * kernel_size
        bound = 1.0 / float(np.sqrt(fan_in))
        wgt = jax.random.uniform(
            sub, (n_hidden_kernels, cin, kernel_size, kernel_size),
            jnp.float32, -bound, bound)
        params["hidden_w"].append(wgt)
        cin = n_hidden_kernels
    key, sub_w, sub_b = jax.random.split(key, 3)
    bound = 1.0 / float(np.sqrt(cin))
    params["out_w"] = jax.random.uniform(sub_w, (1, cin, 1, 1), jnp.float32,
                                         -bound, bound)
    params["out_b"] = jax.random.uniform(sub_b, (1,), jnp.float32, -bound, bound)
    return params


def cnn_reference(params, x_nchw):
    """Pure-JAX reference (lax conv) for the correctness check."""
    x = jnp.transpose(x_nchw, (0, 2, 3, 1)).astype(jnp.float32)
    dn = ("NHWC", "HWIO", "NHWC")
    for wgt in params["hidden_w"]:
        y = jax.lax.conv_general_dilated(
            x, jnp.transpose(wgt, (2, 3, 1, 0)), (1, 1), "SAME",
            dimension_numbers=dn)
        x = jnp.maximum(y, 0.0)
    y = jax.lax.conv_general_dilated(
        x, jnp.transpose(params["out_w"], (2, 3, 1, 0)), (1, 1), "SAME",
        dimension_numbers=dn)
    y = y + params["out_b"].reshape(1, 1, 1, -1)
    return jnp.transpose(y, (0, 3, 1, 2))


if __name__ == "__main__":
    n_input_channels = 4
    n_hidden_layers = 2
    n_hidden_kernels = 8
    kernel_size = 3

    key = jax.random.PRNGKey(0)
    key, pkey, xkey = jax.random.split(key, 3)
    params = init_cnn_params(pkey, n_input_channels, n_hidden_layers,
                             n_hidden_kernels, kernel_size)
    x = jax.random.normal(xkey, (2, n_input_channels, 16, 16), jnp.float32)

    out = jax.block_until_ready(cnn_forward(params, x))
    assert out.shape == (2, 1, 16, 16), out.shape

    ref = jax.block_until_ready(cnn_reference(params, x))
    tol = 1e-4 if COMPUTE_DTYPE == jnp.float32 else 5e-2
    assert jnp.allclose(out, ref, atol=tol, rtol=tol), \
        float(jnp.max(jnp.abs(out - ref)))

    print("KERNEL_OK")
</pallas_src>

<mosaic_0001>
module attributes {stable_mosaic.version = 11 : i64} {
  func.func @_fused_cnn_kernel(%arg0: i32, %arg1: memref<1x8x686xf32, #tpu.memory_space<vmem>>, %arg2: memref<2x8x72xf32, #tpu.memory_space<vmem>>, %arg3: memref<8x8xf32, #tpu.memory_space<vmem>>, %arg4: memref<1x648xf32, #tpu.memory_space<vmem>>, %arg5: memref<1xf32, #tpu.memory_space<smem>>, %arg6: memref<1x1x648xf32, #tpu.memory_space<vmem>>, %arg7: memref<8x686xf32, #tpu.memory_space<vmem>>, %arg8: memref<72x648xf32, #tpu.memory_space<vmem>>) attributes {dimension_semantics = [#tpu.dimension_semantics<parallel>], iteration_bounds = array<i64: 1>, scalar_prefetch = 0 : i64, scratch_operands = 2 : i64, tpu.core_type = #tpu.core_type<tc>, window_params = [{transform_indices = @transform_0, window_bounds = array<i64: 1, 8, 686>}, {pipeline_mode = #tpu.pipeline_mode<synchronous>, transform_indices = @transform_1, window_bounds = array<i64: 2, 8, 72>}, {pipeline_mode = #tpu.pipeline_mode<synchronous>, transform_indices = @transform_2, window_bounds = array<i64: 8, 8>}, {pipeline_mode = #tpu.pipeline_mode<synchronous>, transform_indices = @transform_3, window_bounds = array<i64: 1, 648>}, {transform_indices = @transform_4, window_bounds = array<i64: 1>}, {transform_indices = @transform_5, window_bounds = array<i64: 1, 1, 648>}]} {
    %cst = arith.constant 0.000000e+00 : f32
    %0 = vector.broadcast %cst : f32 to vector<8x19xf32>
    %c0 = arith.constant 0 : index
    %c0_0 = arith.constant 0 : index
    %1 = vector.load %arg7[%c0, %c0_0] : memref<8x686xf32, #tpu.memory_space<vmem>>, vector<8x19xf32>
    tpu.vector_store %arg7[%c0, %c0_0], %0 {strides = array<i32>} : memref<8x686xf32, #tpu.memory_space<vmem>>, vector<8x19xf32>,
    %cst_1 = arith.constant 0.000000e+00 : f32
    %2 = vector.broadcast %cst_1 : f32 to vector<8x19xf32>
    %c0_2 = arith.constant 0 : index
    %c667 = arith.constant 667 : index
    %3 = vector.load %arg7[%c0_2, %c667] : memref<8x686xf32, #tpu.memory_space<vmem>>, vector<8x19xf32>
    tpu.vector_store %arg7[%c0_2, %c667], %2 {strides = array<i32>} : memref<8x686xf32, #tpu.memory_space<vmem>>, vector<8x19xf32>,
    %c0_3 = arith.constant 0 : index
    %c0_4 = arith.constant 0 : index
    %4 = vector.load %arg4[%c0_3, %c0_4] : memref<1x648xf32, #tpu.memory_space<vmem>>, vector<1x648xf32>
    %c0_5 = arith.constant 0 : index
    %c0_6 = arith.constant 0 : index
    %c0_7 = arith.constant 0 : index
    %5 = vector.load %arg1[%c0_5, %c0_6, %c0_7] : memref<1x8x686xf32, #tpu.memory_space<vmem>>, vector<1x8x648xf32>
    %6 = vector.shape_cast %5 : vector<1x8x648xf32> to vector<8x648xf32>
    %c0_8 = arith.constant 0 : index
    %c0_9 = arith.constant 0 : index
    %7 = vector.load %arg8[%c0_8, %c0_9] : memref<72x648xf32, #tpu.memory_space<vmem>>, vector<8x648xf32>
    tpu.vector_store %arg8[%c0_8, %c0_9], %6 {strides = array<i32>} : memref<72x648xf32, #tpu.memory_space<vmem>>, vector<8x648xf32>,
    %c0_10 = arith.constant 0 : index
    %c0_11 = arith.constant 0 : index
    %c1 = arith.constant 1 : index
    %8 = vector.load %arg1[%c0_10, %c0_11, %c1] : memref<1x8x686xf32, #tpu.memory_space<vmem>>, vector<1x8x648xf32>
    %9 = vector.shape_cast %8 : vector<1x8x648xf32> to vector<8x648xf32>
    %c8 = arith.constant 8 : index
    %c0_12 = arith.constant 0 : index
    %10 = vector.load %arg8[%c8, %c0_12] : memref<72x648xf32, #tpu.memory_space<vmem>>, vector<8x648xf32>
    tpu.vector_store %arg8[%c8, %c0_12], %9 {strides = array<i32>} : memref<72x648xf32, #tpu.memory_space<vmem>>, vector<8x648xf32>,
    %c0_13 = arith.constant 0 : index
    %c0_14 = arith.constant 0 : index
    %c2 = arith.constant 2 : index
    %11 = vector.load %arg1[%c0_13, %c0_14, %c2] : memref<1x8x686xf32, #tpu.memory_space<vmem>>, vector<1x8x648xf32>
    %12 = vector.shape_cast %11 : vector<1x8x648xf32> to vector<8x648xf32>
    %c16 = arith.constant 16 : index
    %c0_15 = arith.constant 0 : index
    %13 = vector.load %arg8[%c16, %c0_15] : memref<72x648xf32, #tpu.memory_space<vmem>>, vector<8x648xf32>
    tpu.vector_store %arg8[%c16, %c0_15], %12 {strides = array<i32>} : memref<72x648xf32, #tpu.memory_space<vmem>>, vector<8x648xf32>,
    %c0_16 = arith.constant 0 : index
    %c0_17 = arith.constant 0 : index
    %c18 = arith.constant 18 : index
    %14 = vector.load %arg1[%c0_16, %c0_17, %c18] : memref<1x8x686xf32, #tpu.memory_space<vmem>>, vector<1x8x648xf32>
    %15 = vector.shape_cast %14 : vector<1x8x648xf32> to vector<8x648xf32>
    %c24 = arith.constant 24 : index
    %c0_18 = arith.constant 0 : index
    %16 = vector.load %arg8[%c24, %c0_18] : memref<72x648xf32, #tpu.memory_space<vmem>>, vector<8x648xf32>
    tpu.vector_store %arg8[%c24, %c0_18], %15 {strides = array<i32>} : memref<72x648xf32, #tpu.memory_space<vmem>>, vector<8x648xf32>,
    %c0_19 = arith.constant 0 : index
    %c0_20 = arith.constant 0 : index
    %c19 = arith.constant 19 : index
    %17 = vector.load %arg1[%c0_19, %c0_20, %c19] : memref<1x8x686xf32, #tpu.memory_space<vmem>>, vector<1x8x648xf32>
    %18 = vector.shape_cast %17 : vector<1x8x648xf32> to vector<8x648xf32>
    %c32 = arith.constant 32 : index
    %c0_21 = arith.constant 0 : index
    %19 = vector.load %arg8[%c32, %c0_21] : memref<72x648xf32, #tpu.memory_space<vmem>>, vector<8x648xf32>
    tpu.vector_store %arg8[%c32, %c0_21], %18 {strides = array<i32>} : memref<72x648xf32, #tpu.memory_space<vmem>>, vector<8x648xf32>,
    %c0_22 = arith.constant 0 : index
    %c0_23 = arith.constant 0 : index
    %c20 = arith.constant 20 : index
    %20 = vector.load %arg1[%c0_22, %c0_23, %c20] : memref<1x8x686xf32, #tpu.memory_space<vmem>>, vector<1x8x648xf32>
    %21 = vector.shape_cast %20 : vector<1x8x648xf32> to vector<8x648xf32>
    %c40 = arith.constant 40 : index
    %c0_24 = arith.constant 0 : index
    %22 = vector.load %arg8[%c40, %c0_24] : memref<72x648xf32, #tpu.memory_space<vmem>>, vector<8x648xf32>
    tpu.vector_store %arg8[%c40, %c0_24], %21 {strides = array<i32>} : memref<72x648xf32, #tpu.memory_space<vmem>>, vector<8x648xf32>,
    %c0_25 = arith.constant 0 : index
    %c0_26 = arith.constant 0 : index
    %c36 = arith.constant 36 : index
    %23 = vector.load %arg1[%c0_25, %c0_26, %c36] : memref<1x8x686xf32, #tpu.memory_space<vmem>>, vector<1x8x648xf32>
    %24 = vector.shape_cast %23 : vector<1x8x648xf32> to vector<8x648xf32>
    %c48 = arith.constant 48 : index
    %c0_27 = arith.constant 0 : index
    %25 = vector.load %arg8[%c48, %c0_27] : memref<72x648xf32, #tpu.memory_space<vmem>>, vector<8x648xf32>
    tpu.vector_store %arg8[%c48, %c0_27], %24 {strides = array<i32>} : memref<72x648xf32, #tpu.memory_space<vmem>>, vector<8x648xf32>,
    %c0_28 = arith.constant 0 : index
    %c0_29 = arith.constant 0 : index
    %c37 = arith.constant 37 : index
    %26 = vector.load %arg1[%c0_28, %c0_29, %c37] : memref<1x8x686xf32, #tpu.memory_space<vmem>>, vector<1x8x648xf32>
    %27 = vector.shape_cast %26 : vector<1x8x648xf32> to vector<8x648xf32>
    %c56 = arith.constant 56 : index
    %c0_30 = arith.constant 0 : index
    %28 = vector.load %arg8[%c56, %c0_30] : memref<72x648xf32, #tpu.memory_space<vmem>>, vector<8x648xf32>
    tpu.vector_store %arg8[%c56, %c0_30], %27 {strides = array<i32>} : memref<72x648xf32, #tpu.memory_space<vmem>>, vector<8x648xf32>,
    %c0_31 = arith.constant 0 : index
    %c0_32 = arith.constant 0 : index
    %c38 = arith.constant 38 : index
    %29 = vector.load %arg1[%c0_31, %c0_32, %c38] : memref<1x8x686xf32, #tpu.memory_space<vmem>>, vector<1x8x648xf32>
    %30 = vector.shape_cast %29 : vector<1x8x648xf32> to vector<8x648xf32>
    %c64 = arith.constant 64 : index
    %c0_33 = arith.constant 0 : index
    %31 = vector.load %arg8[%c64, %c0_33] : memref<72x648xf32, #tpu.memory_space<vmem>>, vector<8x648xf32>
    tpu.vector_store %arg8[%c64, %c0_33], %30 {strides = array<i32>} : memref<72x648xf32, #tpu.memory_space<vmem>>, vector<8x648xf32>,
    %c0_34 = arith.constant 0 : index
    %c0_35 = arith.constant 0 : index
    %c0_36 = arith.constant 0 : index
    %32 = vector.load %arg2[%c0_34, %c0_35, %c0_36] : memref<2x8x72xf32, #tpu.memory_space<vmem>>, vector<1x8x72xf32>
    %33 = vector.shape_cast %32 : vector<1x8x72xf32> to vector<8x72xf32>
    %c0_37 = arith.constant 0 : index
    %c0_38 = arith.constant 0 : index
    %34 = vector.load %arg8[%c0_37, %c0_38] : memref<72x648xf32, #tpu.memory_space<vmem>>, vector<72x648xf32>
    %cst_39 = arith.constant dense<0.000000e+00> : vector<8x648xf32>
    %35 = tpu.matmul %33, %34, %cst_39 {dimension_numbers = #tpu.dot_dimension_numbers<[1], [0], [0], [1], [0, 0, 1, 1], [], []>} : vector<8x72xf32>, vector<72x648xf32>, vector<8x648xf32> -> vector<8x648xf32>
    %cst_40 = arith.constant 0.000000e+00 : f32
    %36 = vector.broadcast %cst_40 : f32 to vector<8x648xf32>
    %37 = arith.maximumf %35, %36 : vector<8x648xf32>
    %38 = vector.broadcast %4 : vector<1x648xf32> to vector<8x648xf32>
    %39 = arith.mulf %37, %38 : vector<8x648xf32>
    %c0_41 = arith.constant 0 : index
    %c19_42 = arith.constant 19 : index
    %40 = vector.load %arg7[%c0_41, %c19_42] : memref<8x686xf32, #tpu.memory_space<vmem>>, vector<8x648xf32>
    tpu.vector_store %arg7[%c0_41, %c19_42], %39 {strides = array<i32>} : memref<8x686xf32, #tpu.memory_space<vmem>>, vector<8x648xf32>,
    %c0_43 = arith.constant 0 : index
    %c0_44 = arith.constant 0 : index
    %41 = vector.load %arg7[%c0_43, %c0_44] : memref<8x686xf32, #tpu.memory_space<vmem>>, vector<8x648xf32>
    %c0_45 = arith.constant 0 : index
    %c0_46 = arith.constant 0 : index
    %42 = vector.load %arg8[%c0_45, %c0_46] : memref<72x648xf32, #tpu.memory_space<vmem>>, vector<8x648xf32>
    tpu.vector_store %arg8[%c0_45, %c0_46], %41 {strides = array<i32>} : memref<72x648xf32, #tpu.memory_space<vmem>>, vector<8x648xf32>,
    %c0_47 = arith.constant 0 : index
    %c1_48 = arith.constant 1 : index
    %43 = vector.load %arg7[%c0_47, %c1_48] : memref<8x686xf32, #tpu.memory_space<vmem>>, vector<8x648xf32>
    %c8_49 = arith.constant 8 : index
    %c0_50 = arith.constant 0 : index
    %44 = vector.load %arg8[%c8_49, %c0_50] : memref<72x648xf32, #tpu.memory_space<vmem>>, vector<8x648xf32>
    tpu.vector_store %arg8[%c8_49, %c0_50], %43 {strides = array<i32>} : memref<72x648xf32, #tpu.memory_space<vmem>>, vector<8x648xf32>,
    %c0_51 = arith.constant 0 : index
    %c2_52 = arith.constant 2 : index
    %45 = vector.load %arg7[%c0_51, %c2_52] : memref<8x686xf32, #tpu.memory_space<vmem>>, vector<8x648xf32>
    %c16_53 = arith.constant 16 : index
    %c0_54 = arith.constant 0 : index
    %46 = vector.load %arg8[%c16_53, %c0_54] : memref<72x648xf32, #tpu.memory_space<vmem>>, vector<8x648xf32>
    tpu.vector_store %arg8[%c16_53, %c0_54], %45 {strides = array<i32>} : memref<72x648xf32, #tpu.memory_space<vmem>>, vector<8x648xf32>,
    %c0_55 = arith.constant 0 : index
    %c18_56 = arith.constant 18 : index
    %47 = vector.load %arg7[%c0_55, %c18_56] : memref<8x686xf32, #tpu.memory_space<vmem>>, vector<8x648xf32>
    %c24_57 = arith.constant 24 : index
    %c0_58 = arith.constant 0 : index
    %48 = vector.load %arg8[%c24_57, %c0_58] : memref<72x648xf32, #tpu.memory_space<vmem>>, vector<8x648xf32>
    tpu.vector_store %arg8[%c24_57, %c0_58], %47 {strides = array<i32>} : memref<72x648xf32, #tpu.memory_space<vmem>>, vector<8x648xf32>,
    %c0_59 = arith.constant 0 : index
    %c19_60 = arith.constant 19 : index
    %49 = vector.load %arg7[%c0_59, %c19_60] : memref<8x686xf32, #tpu.memory_space<vmem>>, vector<8x648xf32>
    %c32_61 = arith.constant 32 : index
    %c0_62 = arith.constant 0 : index
    %50 = vector.load %arg8[%c32_61, %c0_62] : memref<72x648xf32, #tpu.memory_space<vmem>>, vector<8x648xf32>
    tpu.vector_store %arg8[%c32_61, %c0_62], %49 {strides = array<i32>} : memref<72x648xf32, #tpu.memory_space<vmem>>, vector<8x648xf32>,
    %c0_63 = arith.constant 0 : index
    %c20_64 = arith.constant 20 : index
    %51 = vector.load %arg7[%c0_63, %c20_64] : memref<8x686xf32, #tpu.memory_space<vmem>>, vector<8x648xf32>
    %c40_65 = arith.constant 40 : index
    %c0_66 = arith.constant 0 : index
    %52 = vector.load %arg8[%c40_65, %c0_66] : memref<72x648xf32, #tpu.memory_space<vmem>>, vector<8x648xf32>
    tpu.vector_store %arg8[%c40_65, %c0_66], %51 {strides = array<i32>} : memref<72x648xf32, #tpu.memory_space<vmem>>, vector<8x648xf32>,
    %c0_67 = arith.constant 0 : index
    %c36_68 = arith.constant 36 : index
    %53 = vector.load %arg7[%c0_67, %c36_68] : memref<8x686xf32, #tpu.memory_space<vmem>>, vector<8x648xf32>
    %c48_69 = arith.constant 48 : index
    %c0_70 = arith.constant 0 : index
    %54 = vector.load %arg8[%c48_69, %c0_70] : memref<72x648xf32, #tpu.memory_space<vmem>>, vector<8x648xf32>
    tpu.vector_store %arg8[%c48_69, %c0_70], %53 {strides = array<i32>} : memref<72x648xf32, #tpu.memory_space<vmem>>, vector<8x648xf32>,
    %c0_71 = arith.constant 0 : index
    %c37_72 = arith.constant 37 : index
    %55 = vector.load %arg7[%c0_71, %c37_72] : memref<8x686xf32, #tpu.memory_space<vmem>>, vector<8x648xf32>
    %c56_73 = arith.constant 56 : index
    %c0_74 = arith.constant 0 : index
    %56 = vector.load %arg8[%c56_73, %c0_74] : memref<72x648xf32, #tpu.memory_space<vmem>>, vector<8x648xf32>
    tpu.vector_store %arg8[%c56_73, %c0_74], %55 {strides = array<i32>} : memref<72x648xf32, #tpu.memory_space<vmem>>, vector<8x648xf32>,
    %c0_75 = arith.constant 0 : index
    %c38_76 = arith.constant 38 : index
    %57 = vector.load %arg7[%c0_75, %c38_76] : memref<8x686xf32, #tpu.memory_space<vmem>>, vector<8x648xf32>
    %c64_77 = arith.constant 64 : index
    %c0_78 = arith.constant 0 : index
    %58 = vector.load %arg8[%c64_77, %c0_78] : memref<72x648xf32, #tpu.memory_space<vmem>>, vector<8x648xf32>
    tpu.vector_store %arg8[%c64_77, %c0_78], %57 {strides = array<i32>} : memref<72x648xf32, #tpu.memory_space<vmem>>, vector<8x648xf32>,
    %c1_79 = arith.constant 1 : index
    %c0_80 = arith.constant 0 : index
    %c0_81 = arith.constant 0 : index
    %59 = vector.load %arg2[%c1_79, %c0_80, %c0_81] : memref<2x8x72xf32, #tpu.memory_space<vmem>>, vector<1x8x72xf32>
    %60 = vector.shape_cast %59 : vector<1x8x72xf32> to vector<8x72xf32>
    %c0_82 = arith.constant 0 : index
    %c0_83 = arith.constant 0 : index
    %61 = vector.load %arg8[%c0_82, %c0_83] : memref<72x648xf32, #tpu.memory_space<vmem>>, vector<72x648xf32>
    %cst_84 = arith.constant dense<0.000000e+00> : vector<8x648xf32>
    %62 = tpu.matmul %60, %61, %cst_84 {dimension_numbers = #tpu.dot_dimension_numbers<[1], [0], [0], [1], [0, 0, 1, 1], [], []>} : vector<8x72xf32>, vector<72x648xf32>, vector<8x648xf32> -> vector<8x648xf32>
    %cst_85 = arith.constant 0.000000e+00 : f32
    %63 = vector.broadcast %cst_85 : f32 to vector<8x648xf32>
    %64 = arith.maximumf %62, %63 : vector<8x648xf32>
    %c0_86 = arith.constant 0 : index
    %c0_87 = arith.constant 0 : index
    %65 = vector.load %arg3[%c0_86, %c0_87] : memref<8x8xf32, #tpu.memory_space<vmem>>, vector<8x8xf32>
    %cst_88 = arith.constant dense<0.000000e+00> : vector<8x648xf32>
    %66 = tpu.matmul %65, %64, %cst_88 {dimension_numbers = #tpu.dot_dimension_numbers<[1], [0], [0], [1], [0, 0, 1, 1], [], []>} : vector<8x8xf32>, vector<8x648xf32>, vector<8x648xf32> -> vector<8x648xf32>
    %67 = vector.extract_strided_slice %66 {offsets = [0, 0], sizes = [1, 648], strides = [1, 1]} : vector<8x648xf32> to vector<1x648xf32>
    %c0_89 = arith.constant 0 : index
    %68 = memref.load %arg5[%c0_89] : memref<1xf32, #tpu.memory_space<smem>>
    %69 = vector.broadcast %68 : f32 to vector<1x648xf32>
    %70 = arith.addf %67, %69 : vector<1x648xf32>
    %c0_90 = arith.constant 0 : index
    %c0_91 = arith.constant 0 : index
    %c0_92 = arith.constant 0 : index
    %71 = vector.load %arg6[%c0_90, %c0_91, %c0_92] : memref<1x1x648xf32, #tpu.memory_space<vmem>>, vector<1x1x648xf32>
    %72 = vector.shape_cast %71 : vector<1x1x648xf32> to vector<1x648xf32>
    %73 = vector.shape_cast %70 : vector<1x648xf32> to vector<1x1x648xf32>
    tpu.vector_store %arg6[%c0_90, %c0_91, %c0_92], %73 {strides = array<i32>} : memref<1x1x648xf32, #tpu.memory_space<vmem>>, vector<1x1x648xf32>,
    return
  }
  func.func @transform_0(%arg0: i32) -> (i32, i32, i32) {
    %c0_i32 = arith.constant 0 : i32
    %c0_i32_0 = arith.constant 0 : i32
    %c0_i32_1 = arith.constant 0 : i32
    return %arg0, %c0_i32, %c0_i32_0 : i32, i32, i32
  }
  func.func @transform_1(%arg0: i32) -> (i32, i32, i32) {
    %c0_i32 = arith.constant 0 : i32
    %c0_i32_0 = arith.constant 0 : i32
    %c0_i32_1 = arith.constant 0 : i32
    %c0_i32_2 = arith.constant 0 : i32
    return %c0_i32, %c0_i32_0, %c0_i32_1 : i32, i32, i32
  }
  func.func @transform_2(%arg0: i32) -> (i32, i32) {
    %c0_i32 = arith.constant 0 : i32
    %c0_i32_0 = arith.constant 0 : i32
    %c0_i32_1 = arith.constant 0 : i32
    return %c0_i32, %c0_i32_0 : i32, i32
  }
  func.func @transform_3(%arg0: i32) -> (i32, i32) {
    %c0_i32 = arith.constant 0 : i32
    %c0_i32_0 = arith.constant 0 : i32
    %c0_i32_1 = arith.constant 0 : i32
    return %c0_i32, %c0_i32_0 : i32, i32
  }
  func.func @transform_4(%arg0: i32) -> i32 {
    %c0_i32 = arith.constant 0 : i32
    %c0_i32_0 = arith.constant 0 : i32
    return %c0_i32 : i32
  }
  func.func @transform_5(%arg0: i32) -> (i32, i32, i32) {
    %c0_i32 = arith.constant 0 : i32
    %c0_i32_0 = arith.constant 0 : i32
    %c0_i32_1 = arith.constant 0 : i32
    return %arg0, %c0_i32, %c0_i32_0 : i32, i32, i32
  }
}

</mosaic_0001>

<llo_original>
// kernel: cnn_forward.1
$region0: #{cnn_forward.1}
  #allocation0 [shape = 'u32[]', space=smem, size = 0x4, offset = 0x4, fixed_abs, tag = 'smem constant byte address 0x4 - core index']
  #allocation1 [shape = 'u32[144,128]{1,0:T(1,128)}', space=vmem, size = 0x12000, scoped, tag = 'internal scratch']
  #allocation2 [shape = 'f32[8,686]{1,0:T(8,128)}', space=vmem, size = 0x6000, scoped, tag = 'scratch operand']
  #allocation3 [shape = 'f32[72,648]{1,0:T(8,128)}', space=vmem, size = 0x36000, scoped, tag = 'scratch operand']
  #allocation4 [shape = 'f32[1]{0:T(128)S(6)}', space=smem, size = 0x200, scoped, tag = 'scoped memory for cnn_forward.1']
  %s0 = inlined_call_operand.vmem [shape: f32[1,8,686], index: 0, kind: input, shape index: {}]
  %s1 = inlined_call_operand.vmem [shape: f32[2,8,72], index: 1, kind: input, shape index: {}]
  %s2 = inlined_call_operand.vmem [shape: f32[8,8], index: 2, kind: input, shape index: {}]
  %s3 = inlined_call_operand.vmem [shape: f32[1,648], index: 3, kind: input, shape index: {}]
  %s4 = inlined_call_operand.<no memory space> [shape: f32[1], index: 4, kind: input, shape index: {}]
  %s5 = inlined_call_operand.vmem [shape: f32[1,1,648], index: 5, kind: output, shape index: {}]
  %s6 = sld [smem:[#allocation0]]
  $region30: #{cnn_forward.1} parent=0
    _
  %s8 = ssub.s32 1, %s6
  %s9 = scalar_select 0, %s8, %s6
  %10 = sst [smem:[#allocation4]] %s4
  // Predicated region
  $region2: #{cnn_forward.1} parent=0 // pred_check
    _
  $region3: #{cnn_forward.1} parent=0 // pred_check_branch
    %12 = sbr.rel (0) target = $region5
  $region4: #{cnn_forward.1} parent=0 // pred_region
    _
  $region5: #{cnn_forward.1} parent=0 // pred_fallthru
    _
  // Predicated region
  $region6: #{cnn_forward.1} parent=0 // pred_check
    _
  $region7: #{cnn_forward.1} parent=0 // pred_check_branch
    %14 = sbr.rel (0) target = $region9
  $region8: #{cnn_forward.1} parent=0 // pred_region
    _
  $region9: #{cnn_forward.1} parent=0 // pred_fallthru
    _
  // Predicated region
  $region10: #{cnn_forward.1} parent=0 // pred_check
    _
  $region11: #{cnn_forward.1} parent=0 // pred_check_branch
    %16 = sbr.rel (0) target = $region13
  $region12: #{cnn_forward.1} parent=0 // pred_region
    _
  $region13: #{cnn_forward.1} parent=0 // pred_fallthru
    _
  // Predicated region
  $region14: #{cnn_forward.1} parent=0 // pred_check
    _
  $region15: #{cnn_forward.1} parent=0 // pred_check_branch
    %18 = sbr.rel (0) target = $region17
  $region16: #{cnn_forward.1} parent=0 // pred_region
    _
  $region17: #{cnn_forward.1} parent=0 // pred_fallthru
    _
  // Predicated region
  $region18: #{cnn_forward.1} parent=0 // pred_check
    _
  $region19: #{cnn_forward.1} parent=0 // pred_check_branch
    %20 = sbr.rel (0) target = $region21
  $region20: #{cnn_forward.1} parent=0 // pred_region
    _
  $region21: #{cnn_forward.1} parent=0 // pred_fallthru
    _
  %vm21 = vcmask 154624
  %22 = vst.msk [vmem:[#allocation2] sm:$0xff] %vm21, 0.0
  %vm23 = vcmask 376024
  %24 = vst.msk [vmem:[#allocation2 + $0x28] sm:$0xff] %vm23, 0.0
  %v25 = vld [vmem:[%s3] sm:$0x3f]
  %v26 = vld [vmem:[%s0] sm:$0xff]
  %v27 = vld [vmem:[%s0 + $0x8] sm:$0xff]
  %v28 = vld [vmem:[%s0 + $0x10] sm:$0xff]
  %v29 = vld [vmem:[%s0 + $0x18] sm:$0xff]
  %v30 = vld [vmem:[%s0 + $0x20] sm:$0xff]
  %v31 = vld [vmem:[%s0 + $0x28] sm:$0xff]
  %32 = vst [vmem:[#allocation3] sm:$0xff] %v26
  %33 = vst [vmem:[#allocation3 + $0x8] sm:$0xff] %v27
  %34 = vst [vmem:[#allocation3 + $0x10] sm:$0xff] %v28
  %35 = vst [vmem:[#allocation3 + $0x18] sm:$0xff] %v29
  %36 = vst [vmem:[#allocation3 + $0x20] sm:$0xff] %v30
  %vm37 = vcmask 64512
  %38 = vst.msk [vmem:[#allocation3 + $0x28] sm:$0xff] %vm37, %v31
  %v39 = vld [vmem:[%s0] sm:$0xff]
  %v40 = vld [vmem:[%s0 + $0x8] sm:$0xff]
  %v41 = vld [vmem:[%s0 + $0x10] sm:$0xff]
  %v42 = vld [vmem:[%s0 + $0x18] sm:$0xff]
  %v43 = vld [vmem:[%s0 + $0x20] sm:$0xff]
  %v44 = vld [vmem:[%s0 + $0x28] sm:$0xff]
  %51 = vrot.lane.b32.xlu0 %v39, 127
  %v52 = vpop.permute.xlu0 %51
  %53 = vrot.lane.b32.xlu0 %v40, 127
  %v54 = vpop.permute.xlu0 %53
  %55 = vrot.lane.b32.xlu0 %v41, 127
  %v56 = vpop.permute.xlu0 %55
  %57 = vrot.lane.b32.xlu0 %v42, 127
  %v58 = vpop.permute.xlu0 %57
  %59 = vrot.lane.b32.xlu0 %v43, 127
  %v60 = vpop.permute.xlu0 %59
  %61 = vrot.lane.b32.xlu0 %v44, 127
  %v62 = vpop.permute.xlu0 %61
  %vm63 = vcmask 1039360
  %v64 = vsel %vm63, %v52, %v54
  %v65 = vsel %vm63, %v54, %v56
  %v66 = vsel %vm63, %v56, %v58
  %v67 = vsel %vm63, %v58, %v60
  %v68 = vsel %vm63, %v60, %v62
  %75 = vst [vmem:[#allocation3 + $0x30] sm:$0xff] %v64
  %76 = vst [vmem:[#allocation3 + $0x38] sm:$0xff] %v65
  %77 = vst [vmem:[#allocation3 + $0x40] sm:$0xff] %v66
  %78 = vst [vmem:[#allocation3 + $0x48] sm:$0xff] %v67
  %79 = vst [vmem:[#allocation3 + $0x50] sm:$0xff] %v68
  %80 = vst.msk [vmem:[#allocation3 + $0x58] sm:$0xff] %vm37, %v62
  %v81 = vld [vmem:[%s0] sm:$0xff]
  %v82 = vld [vmem:[%s0 + $0x8] sm:$0xff]
  %v83 = vld [vmem:[%s0 + $0x10] sm:$0xff]
  %v84 = vld [vmem:[%s0 + $0x18] sm:$0xff]
  %v85 = vld [vmem:[%s0 + $0x20] sm:$0xff]
  %v86 = vld [vmem:[%s0 + $0x28] sm:$0xff]
  %93 = vrot.lane.b32.xlu0 %v81, 126
  %v94 = vpop.permute.xlu0 %93
  %95 = vrot.lane.b32.xlu0 %v82, 126
  %v96 = vpop.permute.xlu0 %95
  %97 = vrot.lane.b32.xlu0 %v83, 126
  %v98 = vpop.permute.xlu0 %97
  %99 = vrot.lane.b32.xlu0 %v84, 126
  %v100 = vpop.permute.xlu0 %99
  %101 = vrot.lane.b32.xlu0 %v85, 126
  %v102 = vpop.permute.xlu0 %101
  %103 = vrot.lane.b32.xlu0 %v86, 126
  %v104 = vpop.permute.xlu0 %103
  %vm105 = vcmask 1031168
  %v106 = vsel %vm105, %v94, %v96
  %v107 = vsel %vm105, %v96, %v98
  %v108 = vsel %vm105, %v98, %v100
  %v109 = vsel %vm105, %v100, %v102
  %v110 = vsel %vm105, %v102, %v104
  %117 = vst [vmem:[#allocation3 + $0x60] sm:$0xff] %v106
  %118 = vst [vmem:[#allocation3 + $0x68] sm:$0xff] %v107
  %119 = vst [vmem:[#allocation3 + $0x70] sm:$0xff] %v108
  %120 = vst [vmem:[#allocation3 + $0x78] sm:$0xff] %v109
  %121 = vst [vmem:[#allocation3 + $0x80] sm:$0xff] %v110
  %122 = vst.msk [vmem:[#allocation3 + $0x88] sm:$0xff] %vm37, %v104
  %v123 = vld [vmem:[%s0] sm:$0xff]
  %v124 = vld [vmem:[%s0 + $0x8] sm:$0xff]
  %v125 = vld [vmem:[%s0 + $0x10] sm:$0xff]
  %v126 = vld [vmem:[%s0 + $0x18] sm:$0xff]
  %v127 = vld [vmem:[%s0 + $0x20] sm:$0xff]
  %v128 = vld [vmem:[%s0 + $0x28] sm:$0xff]
  %135 = vrot.lane.b32.xlu0 %v123, 110
  %v136 = vpop.permute.xlu0 %135
  %137 = vrot.lane.b32.xlu0 %v124, 110
  %v138 = vpop.permute.xlu0 %137
  %139 = vrot.lane.b32.xlu0 %v125, 110
  %v140 = vpop.permute.xlu0 %139
  %141 = vrot.lane.b32.xlu0 %v126, 110
  %v142 = vpop.permute.xlu0 %141
  %143 = vrot.lane.b32.xlu0 %v127, 110
  %v144 = vpop.permute.xlu0 %143
  %145 = vrot.lane.b32.xlu0 %v128, 110
  %v146 = vpop.permute.xlu0 %145
  %vm147 = vcmask 900096
  %v148 = vsel %vm147, %v136, %v138
  %v149 = vsel %vm147, %v138, %v140
  %v150 = vsel %vm147, %v140, %v142
  %v151 = vsel %vm147, %v142, %v144
  %v152 = vsel %vm147, %v144, %v146
  %159 = vst [vmem:[#allocation3 + $0x90] sm:$0xff] %v148
  %160 = vst [vmem:[#allocation3 + $0x98] sm:$0xff] %v149
  %161 = vst [vmem:[#allocation3 + $0xa0] sm:$0xff] %v150
  %162 = vst [vmem:[#allocation3 + $0xa8] sm:$0xff] %v151
  %163 = vst [vmem:[#allocation3 + $0xb0] sm:$0xff] %v152
  %164 = vst.msk [vmem:[#allocation3 + $0xb8] sm:$0xff] %vm37, %v146
  %v165 = vld [vmem:[%s0] sm:$0xff]
  %v166 = vld [vmem:[%s0 + $0x8] sm:$0xff]
  %v167 = vld [vmem:[%s0 + $0x10] sm:$0xff]
  %v168 = vld [vmem:[%s0 + $0x18] sm:$0xff]
  %v169 = vld [vmem:[%s0 + $0x20] sm:$0xff]
  %v170 = vld [vmem:[%s0 + $0x28] sm:$0xff]
  %177 = vrot.lane.b32.xlu0 %v165, 109
  %v178 = vpop.permute.xlu0 %177
  %179 = vrot.lane.b32.xlu0 %v166, 109
  %v180 = vpop.permute.xlu0 %179
  %181 = vrot.lane.b32.xlu0 %v167, 109
  %v182 = vpop.permute.xlu0 %181
  %183 = vrot.lane.b32.xlu0 %v168, 109
  %v184 = vpop.permute.xlu0 %183
  %185 = vrot.lane.b32.xlu0 %v169, 109
  %v186 = vpop.permute.xlu0 %185
  %187 = vrot.lane.b32.xlu0 %v170, 109
  %v188 = vpop.permute.xlu0 %187
  %vm189 = vcmask 891904
  %v190 = vsel %vm189, %v178, %v180
  %v191 = vsel %vm189, %v180, %v182
  %v192 = vsel %vm189, %v182, %v184
  %v193 = vsel %vm189, %v184, %v186
  %v194 = vsel %vm189, %v186, %v188
  %201 = vst [vmem:[#allocation3 + $0xc0] sm:$0xff] %v190
  %202 = vst [vmem:[#allocation3 + $0xc8] sm:$0xff] %v191
  %203 = vst [vmem:[#allocation3 + $0xd0] sm:$0xff] %v192
  %204 = vst [vmem:[#allocation3 + $0xd8] sm:$0xff] %v193
  %205 = vst [vmem:[#allocation3 + $0xe0] sm:$0xff] %v194
  %206 = vst.msk [vmem:[#allocation3 + $0xe8] sm:$0xff] %vm37, %v188
  %v207 = vld [vmem:[%s0] sm:$0xff]
  %v208 = vld [vmem:[%s0 + $0x8] sm:$0xff]
  %v209 = vld [vmem:[%s0 + $0x10] sm:$0xff]
  %v210 = vld [vmem:[%s0 + $0x18] sm:$0xff]
  %v211 = vld [vmem:[%s0 + $0x20] sm:$0xff]
  %v212 = vld [vmem:[%s0 + $0x28] sm:$0xff]
  %219 = vrot.lane.b32.xlu0 %v207, 108
  %v220 = vpop.permute.xlu0 %219
  %221 = vrot.lane.b32.xlu0 %v208, 108
  %v222 = vpop.permute.xlu0 %221
  %223 = vrot.lane.b32.xlu0 %v209, 108
  %v224 = vpop.permute.xlu0 %223
  %225 = vrot.lane.b32.xlu0 %v210, 108
  %v226 = vpop.permute.xlu0 %225
  %227 = vrot.lane.b32.xlu0 %v211, 108
  %v228 = vpop.permute.xlu0 %227
  %229 = vrot.lane.b32.xlu0 %v212, 108
  %v230 = vpop.permute.xlu0 %229
  %vm231 = vcmask 883712
  %v232 = vsel %vm231, %v220, %v222
  %v233 = vsel %vm231, %v222, %v224
  %v234 = vsel %vm231, %v224, %v226
  %v235 = vsel %vm231, %v226, %v228
  %v236 = vsel %vm231, %v228, %v230
  %243 = vst [vmem:[#allocation3 + $0xf0] sm:$0xff] %v232
  %244 = vst [vmem:[#allocation3 + $0xf8] sm:$0xff] %v233
  %245 = vst [vmem:[#allocation3 + $0x100] sm:$0xff] %v234
  %246 = vst [vmem:[#allocation3 + $0x108] sm:$0xff] %v235
  %247 = vst [vmem:[#allocation3 + $0x110] sm:$0xff] %v236
  %248 = vst.msk [vmem:[#allocation3 + $0x118] sm:$0xff] %vm37, %v230
  %v249 = vld [vmem:[%s0] sm:$0xff]
  %v250 = vld [vmem:[%s0 + $0x8] sm:$0xff]
  %v251 = vld [vmem:[%s0 + $0x10] sm:$0xff]
  %v252 = vld [vmem:[%s0 + $0x18] sm:$0xff]
  %v253 = vld [vmem:[%s0 + $0x20] sm:$0xff]
  %v254 = vld [vmem:[%s0 + $0x28] sm:$0xff]
  %261 = vrot.lane.b32.xlu0 %v249, 92
  %v262 = vpop.permute.xlu0 %261
  %263 = vrot.lane.b32.xlu0 %v250, 92
  %v264 = vpop.permute.xlu0 %263
  %265 = vrot.lane.b32.xlu0 %v251, 92
  %v266 = vpop.permute.xlu0 %265
  %267 = vrot.lane.b32.xlu0 %v252, 92
  %v268 = vpop.permute.xlu0 %267
  %269 = vrot.lane.b32.xlu0 %v253, 92
  %v270 = vpop.permute.xlu0 %269
  %271 = vrot.lane.b32.xlu0 %v254, 92
  %v272 = vpop.permute.xlu0 %271
  %vm273 = vcmask 752640
  %v274 = vsel %vm273, %v262, %v264
  %v275 = vsel %vm273, %v264, %v266
  %v276 = vsel %vm273, %v266, %v268
  %v277 = vsel %vm273, %v268, %v270
  %v278 = vsel %vm273, %v270, %v272
  %285 = vst [vmem:[#allocation3 + $0x120] sm:$0xff] %v274
  %286 = vst [vmem:[#allocation3 + $0x128] sm:$0xff] %v275
  %287 = vst [vmem:[#allocation3 + $0x130] sm:$0xff] %v276
  %288 = vst [vmem:[#allocation3 + $0x138] sm:$0xff] %v277
  %289 = vst [vmem:[#allocation3 + $0x140] sm:$0xff] %v278
  %290 = vst.msk [vmem:[#allocation3 + $0x148] sm:$0xff] %vm37, %v272
  %v291 = vld [vmem:[%s0] sm:$0xff]
  %v292 = vld [vmem:[%s0 + $0x8] sm:$0xff]
  %v293 = vld [vmem:[%s0 + $0x10] sm:$0xff]
  %v294 = vld [vmem:[%s0 + $0x18] sm:$0xff]
  %v295 = vld [vmem:[%s0 + $0x20] sm:$0xff]
  %v296 = vld [vmem:[%s0 + $0x28] sm:$0xff]
  %303 = vrot.lane.b32.xlu0 %v291, 91
  %v304 = vpop.permute.xlu0 %303
  %305 = vrot.lane.b32.xlu0 %v292, 91
  %v306 = vpop.permute.xlu0 %305
  %307 = vrot.lane.b32.xlu0 %v293, 91
  %v308 = vpop.permute.xlu0 %307
  %309 = vrot.lane.b32.xlu0 %v294, 91
  %v310 = vpop.permute.xlu0 %309
  %311 = vrot.lane.b32.xlu0 %v295, 91
  %v312 = vpop.permute.xlu0 %311
  %313 = vrot.lane.b32.xlu0 %v296, 91
  %v314 = vpop.permute.xlu0 %313
  %vm315 = vcmask 744448
  %v316 = vsel %vm315, %v304, %v306
  %v317 = vsel %vm315, %v306, %v308
  %v318 = vsel %vm315, %v308, %v310
  %v319 = vsel %vm315, %v310, %v312
  %v320 = vsel %vm315, %v312, %v314
  %327 = vst [vmem:[#allocation3 + $0x150] sm:$0xff] %v316
  %328 = vst [vmem:[#allocation3 + $0x158] sm:$0xff] %v317
  %329 = vst [vmem:[#allocation3 + $0x160] sm:$0xff] %v318
  %330 = vst [vmem:[#allocation3 + $0x168] sm:$0xff] %v319
  %331 = vst [vmem:[#allocation3 + $0x170] sm:$0xff] %v320
  %332 = vst.msk [vmem:[#allocation3 + $0x178] sm:$0xff] %vm37, %v314
  %v333 = vld [vmem:[%s0] sm:$0xff]
  %v334 = vld [vmem:[%s0 + $0x8] sm:$0xff]
  %v335 = vld [vmem:[%s0 + $0x10] sm:$0xff]
  %v336 = vld [vmem:[%s0 + $0x18] sm:$0xff]
  %v337 = vld [vmem:[%s0 + $0x20] sm:$0xff]
  %v338 = vld [vmem:[%s0 + $0x28] sm:$0xff]
  %345 = vrot.lane.b32.xlu0 %v333, 90
  %v346 = vpop.permute.xlu0 %345
  %347 = vrot.lane.b32.xlu0 %v334, 90
  %v348 = vpop.permute.xlu0 %347
  %349 = vrot.lane.b32.xlu0 %v335, 90
  %v350 = vpop.permute.xlu0 %349
  %351 = vrot.lane.b32.xlu0 %v336, 90
  %v352 = vpop.permute.xlu0 %351
  %353 = vrot.lane.b32.xlu0 %v337, 90
  %v354 = vpop.permute.xlu0 %353
  %355 = vrot.lane.b32.xlu0 %v338, 90
  %v356 = vpop.permute.xlu0 %355
  %vm357 = vcmask 736256
  %v358 = vsel %vm357, %v346, %v348
  %v359 = vsel %vm357, %v348, %v350
  %v360 = vsel %vm357, %v350, %v352
  %v361 = vsel %vm357, %v352, %v354
  %v362 = vsel %vm357, %v354, %v356
  %369 = vst [vmem:[#allocation3 + $0x180] sm:$0xff] %v358
  %370 = vst [vmem:[#allocation3 + $0x188] sm:$0xff] %v359
  %371 = vst [vmem:[#allocation3 + $0x190] sm:$0xff] %v360
  %372 = vst [vmem:[#allocation3 + $0x198] sm:$0xff] %v361
  %373 = vst [vmem:[#allocation3 + $0x1a0] sm:$0xff] %v362
  %374 = vst.msk [vmem:[#allocation3 + $0x1a8] sm:$0xff] %vm37, %v356
  %v375 = vld [vmem:[%s1] sm:$0xff]
  %v376 = vld [vmem:[#allocation3] sm:$0xff]
  %v377 = vld [vmem:[#allocation3 + $0x8] sm:$0xff]
  %v378 = vld [vmem:[#allocation3 + $0x10] sm:$0xff]
  %v379 = vld [vmem:[#allocation3 + $0x18] sm:$0xff]
  %v380 = vld [vmem:[#allocation3 + $0x20] sm:$0xff]
  %v381 = vld [vmem:[#allocation3 + $0x28] sm:$0xff]
  %v382 = vld [vmem:[#allocation3 + $0x30] sm:$0xff]
  %v383 = vld [vmem:[#allocation3 + $0x38] sm:$0xff]
  %v384 = vld [vmem:[#allocation3 + $0x40] sm:$0xff]
  %v385 = vld [vmem:[#allocation3 + $0x48] sm:$0xff]
  %v386 = vld [vmem:[#allocation3 + $0x50] sm:$0xff]
  %v387 = vld [vmem:[#allocation3 + $0x58] sm:$0xff]
  %v388 = vld [vmem:[#allocation3 + $0x60] sm:$0xff]
  %v389 = vld [vmem:[#allocation3 + $0x68] sm:$0xff]
  %v390 = vld [vmem:[#allocation3 + $0x70] sm:$0xff]
  %v391 = vld [vmem:[#allocation3 + $0x78] sm:$0xff]
  %v392 = vld [vmem:[#allocation3 + $0x80] sm:$0xff]
  %v393 = vld [vmem:[#allocation3 + $0x88] sm:$0xff]
  %v394 = vld [vmem:[#allocation3 + $0x90] sm:$0xff]
  %v395 = vld [vmem:[#allocation3 + $0x98] sm:$0xff]
  %v396 = vld [vmem:[#allocation3 + $0xa0] sm:$0xff]
  %v397 = vld [vmem:[#allocation3 + $0xa8] sm:$0xff]
  %v398 = vld [vmem:[#allocation3 + $0xb0] sm:$0xff]
  %v399 = vld [vmem:[#allocation3 + $0xb8] sm:$0xff]
  %v400 = vld [vmem:[#allocation3 + $0xc0] sm:$0xff]
  %v401 = vld [vmem:[#allocation3 + $0xc8] sm:$0xff]
  %v402 = vld [vmem:[#allocation3 + $0xd0] sm:$0xff]
  %v403 = vld [vmem:[#allocation3 + $0xd8] sm:$0xff]
  %v404 = vld [vmem:[#allocation3 + $0xe0] sm:$0xff]
  %v405 = vld [vmem:[#allocation3 + $0xe8] sm:$0xff]
  %v406 = vld [vmem:[#allocation3 + $0xf0] sm:$0xff]
  %v407 = vld [vmem:[#allocation3 + $0xf8] sm:$0xff]
  %v408 = vld [vmem:[#allocation3 + $0x100] sm:$0xff]
  %v409 = vld [vmem:[#allocation3 + $0x108] sm:$0xff]
  %v410 = vld [vmem:[#allocation3 + $0x110] sm:$0xff]
  %v411 = vld [vmem:[#allocation3 + $0x118] sm:$0xff]
  %v412 = vld [vmem:[#allocation3 + $0x120] sm:$0xff]
  %v413 = vld [vmem:[#allocation3 + $0x128] sm:$0xff]
  %v414 = vld [vmem:[#allocation3 + $0x130] sm:$0xff]
  %v415 = vld [vmem:[#allocation3 + $0x138] sm:$0xff]
  %v416 = vld [vmem:[#allocation3 + $0x140] sm:$0xff]
  %v417 = vld [vmem:[#allocation3 + $0x148] sm:$0xff]
  %v418 = vld [vmem:[#allocation3 + $0x150] sm:$0xff]
  %v419 = vld [vmem:[#allocation3 + $0x158] sm:$0xff]
  %v420 = vld [vmem:[#allocation3 + $0x160] sm:$0xff]
  %v421 = vld [vmem:[#allocation3 + $0x168] sm:$0xff]
  %v422 = vld [vmem:[#allocation3 + $0x170] sm:$0xff]
  %v423 = vld [vmem:[#allocation3 + $0x178] sm:$0xff]
  %v424 = vld [vmem:[#allocation3 + $0x180] sm:$0xff]
  %v425 = vld [vmem:[#allocation3 + $0x188] sm:$0xff]
  %v426 = vld [vmem:[#allocation3 + $0x190] sm:$0xff]
  %v427 = vld [vmem:[#allocation3 + $0x198] sm:$0xff]
  %v428 = vld [vmem:[#allocation3 + $0x1a0] sm:$0xff]
  %v429 = vld [vmem:[#allocation3 + $0x1a8] sm:$0xff]
  %vm430 = vcmask 588800
  %v432 = vsel %vm430, %v375, 0
  %434 = vmatprep.subr.mxu0 0.0
  %435 = vmatpush1.msra.mxu0 0.0
  %436 = vmatprep.subr.mxu0 0.0
  %437 = vmatpush1.msra.mxu0 0.0
  %438 = vmatprep.subr.mxu0 0.0
  %439 = vmatpush1.msra.mxu0 0.0
  %440 = vmatprep.subr.mxu0 0.0
  %441 = vmatpush1.msra.mxu0 0.0
  %442 = vmatprep.subr.mxu0 0.0
  %443 = vmatpush1.msra.mxu0 0.0
  %444 = vmatprep.subr.mxu0 0.0
  %445 = vmatpush1.msra.mxu0 0.0
  %446 = vmatprep.subr.mxu0 0.0
  %447 = vmatpush1.msra.mxu0 0.0
  %448 = vmatprep.subr.mxu0 %v425
  %449 = vmatpush1.msra.mxu0 %v424
  %450 = vmatprep.subr.mxu0 %v419
  %451 = vmatpush1.msra.mxu0 %v418
  %452 = vmatprep.subr.mxu0 %v413
  %453 = vmatpush1.msra.mxu0 %v412
  %454 = vmatprep.subr.mxu0 %v407
  %455 = vmatpush1.msra.mxu0 %v406
  %456 = vmatprep.subr.mxu0 %v401
  %457 = vmatpush1.msra.mxu0 %v400
  %458 = vmatprep.subr.mxu0 %v395
  %459 = vmatpush1.msra.mxu0 %v394
  %460 = vmatprep.subr.mxu0 %v389
  %461 = vmatpush1.msra.mxu0 %v388
  %462 = vmatprep.subr.mxu0 %v383
  %463 = vmatpush1.msra.mxu0 %v382
  %464 = vmatprep.subr.mxu0 %v377
  %465 = vmatpush1.msra.mxu0 %v376
  %466 = vmatprep.subr.mxu0 0.0
  %467 = vmatpush2.msra.mxu0 0.0
  %468 = vmatprep.subr.mxu0 0.0
  %469 = vmatpush2.msra.mxu0 0.0
  %470 = vmatprep.subr.mxu0 0.0
  %471 = vmatpush2.msra.mxu0 0.0
  %472 = vmatprep.subr.mxu0 0.0
  %473 = vmatpush2.msra.mxu0 0.0
  %474 = vmatprep.subr.mxu0 0.0
  %475 = vmatpush2.msra.mxu0 0.0
  %476 = vmatprep.subr.mxu0 0.0
  %477 = vmatpush2.msra.mxu0 0.0
  %478 = vmatprep.subr.mxu0 0.0
  %479 = vmatpush2.msra.mxu0 0.0
  %480 = vmatprep.subr.mxu0 0.0
  %481 = vmatpush2.msra.mxu0 0.0
  %482 = vmatprep.subr.mxu0 0.0
  %483 = vmatpush2.msra.mxu0 0.0
  %484 = vmatprep.subr.mxu0 0.0
  %485 = vmatpush2.msra.mxu0 0.0
  %486 = vmatprep.subr.mxu0 0.0
  %487 = vmatpush2.msra.mxu0 0.0
  %488 = vmatprep.subr.mxu0 0.0
  %489 = vmatpush2.msra.mxu0 0.0
  %490 = vmatprep.subr.mxu0 0.0
  %491 = vmatpush2.msra.mxu0 0.0
  %492 = vmatprep.subr.mxu0 0.0
  %493 = vmatpush2.msra.mxu0 0.0
  %494 = vmatprep.subr.mxu0 0.0
  %495 = vmatpush2.msra.mxu0 0.0
  %496 = vmatprep.subr.mxu0 0.0
  %497 = vmatpush2.msra.mxu0 0.0
  %498 = vmatprep.mubr.f32.mxu0 0.0
  %499 = vmatmul.mubr.f32.gmra.mxu0 %v432
  %v500 = vpop.f32.mrf.mxu0
  %v501 = vadd.f32 0.0, %v500
  %v502 = vpop.f32.mrf.mxu0
  %v503 = vadd.f32 0.0, %v502
  %504 = vdwg.mxu0
  %505 = vmatprep.subr.mxu0 0.0
  %506 = vmatpush1.msra.mxu0 0.0
  %507 = vmatprep.subr.mxu0 0.0
  %508 = vmatpush1.msra.mxu0 0.0
  %509 = vmatprep.subr.mxu0 0.0
  %510 = vmatpush1.msra.mxu0 0.0
  %511 = vmatprep.subr.mxu0 0.0
  %512 = vmatpush1.msra.mxu0 0.0
  %513 = vmatprep.subr.mxu0 0.0
  %514 = vmatpush1.msra.mxu0 0.0
  %515 = vmatprep.subr.mxu0 0.0
  %516 = vmatpush1.msra.mxu0 0.0
  %517 = vmatprep.subr.mxu0 0.0
  %518 = vmatpush1.msra.mxu0 0.0
  %519 = vmatprep.subr.mxu0 %v427
  %520 = vmatpush1.msra.mxu0 %v426
  %521 = vmatprep.subr.mxu0 %v421
  %522 = vmatpush1.msra.mxu0 %v420
  %523 = vmatprep.subr.mxu0 %v415
  %524 = vmatpush1.msra.mxu0 %v414
  %525 = vmatprep.subr.mxu0 %v409
  %526 = vmatpush1.msra.mxu0 %v408
  %527 = vmatprep.subr.mxu0 %v403
  %528 = vmatpush1.msra.mxu0 %v402
  %529 = vmatprep.subr.mxu0 %v397
  %530 = vmatpush1.msra.mxu0 %v396
  %531 = vmatprep.subr.mxu0 %v391
  %532 = vmatpush1.msra.mxu0 %v390
  %533 = vmatprep.subr.mxu0 %v385
  %534 = vmatpush1.msra.mxu0 %v384
  %535 = vmatprep.subr.mxu0 %v379
  %536 = vmatpush1.msra.mxu0 %v378
  %537 = vmatprep.subr.mxu0 0.0
  %538 = vmatpush2.msra.mxu0 0.0
  %539 = vmatprep.subr.mxu0 0.0
  %540 = vmatpush2.msra.mxu0 0.0
  %541 = vmatprep.subr.mxu0 0.0
  %542 = vmatpush2.msra.mxu0 0.0
  %543 = vmatprep.subr.mxu0 0.0
  %544 = vmatpush2.msra.mxu0 0.0
  %545 = vmatprep.subr.mxu0 0.0
  %546 = vmatpush2.msra.mxu0 0.0
  %547 = vmatprep.subr.mxu0 0.0
  %548 = vmatpush2.msra.mxu0 0.0
  %549 = vmatprep.subr.mxu0 0.0
  %550 = vmatpush2.msra.mxu0 0.0
  %551 = vmatprep.subr.mxu0 0.0
  %552 = vmatpush2.msra.mxu0 0.0
  %553 = vmatprep.subr.mxu0 0.0
  %554 = vmatpush2.msra.mxu0 0.0
  %555 = vmatprep.subr.mxu0 0.0
  %556 = vmatpush2.msra.mxu0 0.0
  %557 = vmatprep.subr.mxu0 0.0
  %558 = vmatpush2.msra.mxu0 0.0
  %559 = vmatprep.subr.mxu0 0.0
  %560 = vmatpush2.msra.mxu0 0.0
  %561 = vmatprep.subr.mxu0 0.0
  %562 = vmatpush2.msra.mxu0 0.0
  %563 = vmatprep.subr.mxu0 0.0
  %564 = vmatpush2.msra.mxu0 0.0
  %565 = vmatprep.subr.mxu0 0.0
  %566 = vmatpush2.msra.mxu0 0.0
  %567 = vmatprep.subr.mxu0 0.0
  %568 = vmatpush2.msra.mxu0 0.0
  %569 = vmatprep.mubr.f32.mxu0 0.0
  %570 = vmatmul.mubr.f32.gmra.mxu0 %v432
  %v571 = vpop.f32.mrf.mxu0
  %v572 = vadd.f32 0.0, %v571
  %v573 = vpop.f32.mrf.mxu0
  %v574 = vadd.f32 0.0, %v573
  %575 = vdwg.mxu0
  %576 = vmatprep.subr.mxu0 0.0
  %577 = vmatpush1.msra.mxu0 0.0
  %578 = vmatprep.subr.mxu0 0.0
  %579 = vmatpush1.msra.mxu0 0.0
  %580 = vmatprep.subr.mxu0 0.0
  %581 = vmatpush1.msra.mxu0 0.0
  %582 = vmatprep.subr.mxu0 0.0
  %583 = vmatpush1.msra.mxu0 0.0
  %584 = vmatprep.subr.mxu0 0.0
  %585 = vmatpush1.msra.mxu0 0.0
  %586 = vmatprep.subr.mxu0 0.0
  %587 = vmatpush1.msra.mxu0 0.0
  %588 = vmatprep.subr.mxu0 0.0
  %589 = vmatpush1.msra.mxu0 0.0
  %590 = vmatprep.subr.mxu0 %v429
  %591 = vmatpush1.msra.mxu0 %v428
  %592 = vmatprep.subr.mxu0 %v423
  %593 = vmatpush1.msra.mxu0 %v422
  %594 = vmatprep.subr.mxu0 %v417
  %595 = vmatpush1.msra.mxu0 %v416
  %596 = vmatprep.subr.mxu0 %v411
  %597 = vmatpush1.msra.mxu0 %v410
  %598 = vmatprep.subr.mxu0 %v405
  %599 = vmatpush1.msra.mxu0 %v404
  %600 = vmatprep.subr.mxu0 %v399
  %601 = vmatpush1.msra.mxu0 %v398
  %602 = vmatprep.subr.mxu0 %v393
  %603 = vmatpush1.msra.mxu0 %v392
  %604 = vmatprep.subr.mxu0 %v387
  %605 = vmatpush1.msra.mxu0 %v386
  %606 = vmatprep.subr.mxu0 %v381
  %607 = vmatpush1.msra.mxu0 %v380
  %608 = vmatprep.subr.mxu0 0.0
  %609 = vmatpush2.msra.mxu0 0.0
  %610 = vmatprep.subr.mxu0 0.0
  %611 = vmatpush2.msra.mxu0 0.0
  %612 = vmatprep.subr.mxu0 0.0
  %613 = vmatpush2.msra.mxu0 0.0
  %614 = vmatprep.subr.mxu0 0.0
  %615 = vmatpush2.msra.mxu0 0.0
  %616 = vmatprep.subr.mxu0 0.0
  %617 = vmatpush2.msra.mxu0 0.0
  %618 = vmatprep.subr.mxu0 0.0
  %619 = vmatpush2.msra.mxu0 0.0
  %620 = vmatprep.subr.mxu0 0.0
  %621 = vmatpush2.msra.mxu0 0.0
  %622 = vmatprep.subr.mxu0 0.0
  %623 = vmatpush2.msra.mxu0 0.0
  %624 = vmatprep.subr.mxu0 0.0
  %625 = vmatpush2.msra.mxu0 0.0
  %626 = vmatprep.subr.mxu0 0.0
  %627 = vmatpush2.msra.mxu0 0.0
  %628 = vmatprep.subr.mxu0 0.0
  %629 = vmatpush2.msra.mxu0 0.0
  %630 = vmatprep.subr.mxu0 0.0
  %631 = vmatpush2.msra.mxu0 0.0
  %632 = vmatprep.subr.mxu0 0.0
  %633 = vmatpush2.msra.mxu0 0.0
  %634 = vmatprep.subr.mxu0 0.0
  %635 = vmatpush2.msra.mxu0 0.0
  %636 = vmatprep.subr.mxu0 0.0
  %637 = vmatpush2.msra.mxu0 0.0
  %638 = vmatprep.subr.mxu0 0.0
  %639 = vmatpush2.msra.mxu0 0.0
  %640 = vmatprep.mubr.f32.mxu0 0.0
  %641 = vmatmul.mubr.f32.gmra.mxu0 %v432
  %v642 = vpop.f32.mrf.mxu0
  %v643 = vadd.f32 0.0, %v642
  %v644 = vpop.f32.mrf.mxu0
  %v645 = vadd.f32 0.0, %v644
  %646 = vdwg.mxu0
  %v647 = vmax.f32 %v501, 0.0
  %v648 = vmax.f32 %v503, 0.0
  %v649 = vmax.f32 %v572, 0.0
  %v650 = vmax.f32 %v574, 0.0
  %v651 = vmax.f32 %v643, 0.0
  %v652 = vmax.f32 %v645, 0.0
  %v654 = vlaneseq
  %v655 = vshrl.u32 %v654, 7
  %v656 = vsub.s32 0, %v655
  %v657 = vrot.slane %v25, %v656
  %v658 = vlaneseq
  %v659 = vshrl.u32 %v658, 7
  %v660 = vsub.s32 1, %v659
  %v661 = vrot.slane %v25, %v660
  %v662 = vlaneseq
  %v663 = vshrl.u32 %v662, 7
  %v664 = vsub.s32 2, %v663
  %v665 = vrot.slane %v25, %v664
  %v666 = vlaneseq
  %v667 = vshrl.u32 %v666, 7
  %v668 = vsub.s32 3, %v667
  %v669 = vrot.slane %v25, %v668
  %v670 = vlaneseq
  %v671 = vshrl.u32 %v670, 7
  %v672 = vsub.s32 4, %v671
  %v673 = vrot.slane %v25, %v672
  %v674 = vlaneseq
  %v675 = vshrl.u32 %v674, 7
  %v676 = vsub.s32 5, %v675
  %v677 = vrot.slane %v25, %v676
  %v684 = vmul.f32 %v647, %v657
  %v685 = vmul.f32 %v648, %v661
  %v686 = vmul.f32 %v649, %v665
  %v687 = vmul.f32 %v650, %v669
  %v688 = vmul.f32 %v651, %v673
  %v689 = vmul.f32 %v652, %v677
  %696 = vrot.lane.b32.xlu0 %v684, 19
  %v697 = vpop.permute.xlu0 %696
  %698 = vrot.lane.b32.xlu0 %v685, 19
  %v699 = vpop.permute.xlu0 %698
  %700 = vrot.lane.b32.xlu0 %v686, 19
  %v701 = vpop.permute.xlu0 %700
  %702 = vrot.lane.b32.xlu0 %v687, 19
  %v703 = vpop.permute.xlu0 %702
  %704 = vrot.lane.b32.xlu0 %v688, 19
  %v705 = vpop.permute.xlu0 %704
  %706 = vrot.lane.b32.xlu0 %v689, 19
  %v707 = vpop.permute.xlu0 %706
  %v708 = vsel %vm21, %v697, %v699
  %v709 = vsel %vm21, %v699, %v701
  %v710 = vsel %vm21, %v701, %v703
  %v711 = vsel %vm21, %v703, %v705
  %v712 = vsel %vm21, %v705, %v707
  %vm719 = vcmask 1047704
  %720 = vst.msk [vmem:[#allocation2] sm:$0xff] %vm719, %v697
  %721 = vst [vmem:[#allocation2 + $0x8] sm:$0xff] %v708
  %722 = vst [vmem:[#allocation2 + $0x10] sm:$0xff] %v709
  %723 = vst [vmem:[#allocation2 + $0x18] sm:$0xff] %v710
  %724 = vst [vmem:[#allocation2 + $0x20] sm:$0xff] %v711
  %vm725 = vcmask 220160
  %726 = vst.msk [vmem:[#allocation2 + $0x28] sm:$0xff] %vm725, %v712
  %v727 = vld [vmem:[#allocation2] sm:$0xff]
  %v728 = vld [vmem:[#allocation2 + $0x8] sm:$0xff]
  %v729 = vld [vmem:[#allocation2 + $0x10] sm:$0xff]
  %v730 = vld [vmem:[#allocation2 + $0x18] sm:$0xff]
  %v731 = vld [vmem:[#allocation2 + $0x20] sm:$0xff]
  %v732 = vld [vmem:[#allocation2 + $0x28] sm:$0xff]
  %733 = vst [vmem:[#allocation3] sm:$0xff] %v727
  %734 = vst [vmem:[#allocation3 + $0x8] sm:$0xff] %v728
  %735 = vst [vmem:[#allocation3 + $0x10] sm:$0xff] %v729
  %736 = vst [vmem:[#allocation3 + $0x18] sm:$0xff] %v730
  %737 = vst [vmem:[#allocation3 + $0x20] sm:$0xff] %v731
  %738 = vst.msk [vmem:[#allocation3 + $0x28] sm:$0xff] %vm37, %v732
  %v739 = vld [vmem:[#allocation2] sm:$0xff]
  %v740 = vld [vmem:[#allocation2 + $0x8] sm:$0xff]
  %v741 = vld [vmem:[#allocation2 + $0x10] sm:$0xff]
  %v742 = vld [vmem:[#allocation2 + $0x18] sm:$0xff]
  %v743 = vld [vmem:[#allocation2 + $0x20] sm:$0xff]
  %v744 = vld [vmem:[#allocation2 + $0x28] sm:$0xff]
  %751 = vrot.lane.b32.xlu0 %v739, 127
  %v752 = vpop.permute.xlu0 %751
  %753 = vrot.lane.b32.xlu0 %v740, 127
  %v754 = vpop.permute.xlu0 %753
  %755 = vrot.lane.b32.xlu0 %v741, 127
  %v756 = vpop.permute.xlu0 %755
  %757 = vrot.lane.b32.xlu0 %v742, 127
  %v758 = vpop.permute.xlu0 %757
  %759 = vrot.lane.b32.xlu0 %v743, 127
  %v760 = vpop.permute.xlu0 %759
  %761 = vrot.lane.b32.xlu0 %v744, 127
  %v762 = vpop.permute.xlu0 %761
  %v763 = vsel %vm63, %v752, %v754
  %v764 = vsel %vm63, %v754, %v756
  %v765 = vsel %vm63, %v756, %v758
  %v766 = vsel %vm63, %v758, %v760
  %v767 = vsel %vm63, %v760, %v762
  %774 = vst [vmem:[#allocation3 + $0x30] sm:$0xff] %v763
  %775 = vst [vmem:[#allocation3 + $0x38] sm:$0xff] %v764
  %776 = vst [vmem:[#allocation3 + $0x40] sm:$0xff] %v765
  %777 = vst [vmem:[#allocation3 + $0x48] sm:$0xff] %v766
  %778 = vst [vmem:[#allocation3 + $0x50] sm:$0xff] %v767
  %779 = vst.msk [vmem:[#allocation3 + $0x58] sm:$0xff] %vm37, %v762
  %v780 = vld [vmem:[#allocation2] sm:$0xff]
  %v781 = vld [vmem:[#allocation2 + $0x8] sm:$0xff]
  %v782 = vld [vmem:[#allocation2 + $0x10] sm:$0xff]
  %v783 = vld [vmem:[#allocation2 + $0x18] sm:$0xff]
  %v784 = vld [vmem:[#allocation2 + $0x20] sm:$0xff]
  %v785 = vld [vmem:[#allocation2 + $0x28] sm:$0xff]
  %792 = vrot.lane.b32.xlu0 %v780, 126
  %v793 = vpop.permute.xlu0 %792
  %794 = vrot.lane.b32.xlu0 %v781, 126
  %v795 = vpop.permute.xlu0 %794
  %796 = vrot.lane.b32.xlu0 %v782, 126
  %v797 = vpop.permute.xlu0 %796
  %798 = vrot.lane.b32.xlu0 %v783, 126
  %v799 = vpop.permute.xlu0 %798
  %800 = vrot.lane.b32.xlu0 %v784, 126
  %v801 = vpop.permute.xlu0 %800
  %802 = vrot.lane.b32.xlu0 %v785, 126
  %v803 = vpop.permute.xlu0 %802
  %v804 = vsel %vm105, %v793, %v795
  %v805 = vsel %vm105, %v795, %v797
  %v806 = vsel %vm105, %v797, %v799
  %v807 = vsel %vm105, %v799, %v801
  %v808 = vsel %vm105, %v801, %v803
  %815 = vst [vmem:[#allocation3 + $0x60] sm:$0xff] %v804
  %816 = vst [vmem:[#allocation3 + $0x68] sm:$0xff] %v805
  %817 = vst [vmem:[#allocation3 + $0x70] sm:$0xff] %v806
  %818 = vst [vmem:[#allocation3 + $0x78] sm:$0xff] %v807
  %819 = vst [vmem:[#allocation3 + $0x80] sm:$0xff] %v808
  %820 = vst.msk [vmem:[#allocation3 + $0x88] sm:$0xff] %vm37, %v803
  %v821 = vld [vmem:[#allocation2] sm:$0xff]
  %v822 = vld [vmem:[#allocation2 + $0x8] sm:$0xff]
  %v823 = vld [vmem:[#allocation2 + $0x10] sm:$0xff]
  %v824 = vld [vmem:[#allocation2 + $0x18] sm:$0xff]
  %v825 = vld [vmem:[#allocation2 + $0x20] sm:$0xff]
  %v826 = vld [vmem:[#allocation2 + $0x28] sm:$0xff]
  %833 = vrot.lane.b32.xlu0 %v821, 110
  %v834 = vpop.permute.xlu0 %833
  %835 = vrot.lane.b32.xlu0 %v822, 110
  %v836 = vpop.permute.xlu0 %835
  %837 = vrot.lane.b32.xlu0 %v823, 110
  %v838 = vpop.permute.xlu0 %837
  %839 = vrot.lane.b32.xlu0 %v824, 110
  %v840 = vpop.permute.xlu0 %839
  %841 = vrot.lane.b32.xlu0 %v825, 110
  %v842 = vpop.permute.xlu0 %841
  %843 = vrot.lane.b32.xlu0 %v826, 110
  %v844 = vpop.permute.xlu0 %843
  %v845 = vsel %vm147, %v834, %v836
  %v846 = vsel %vm147, %v836, %v838
  %v847 = vsel %vm147, %v838, %v840
  %v848 = vsel %vm147, %v840, %v842
  %v849 = vsel %vm147, %v842, %v844
  %856 = vst [vmem:[#allocation3 + $0x90] sm:$0xff] %v845
  %857 = vst [vmem:[#allocation3 + $0x98] sm:$0xff] %v846
  %858 = vst [vmem:[#allocation3 + $0xa0] sm:$0xff] %v847
  %859 = vst [vmem:[#allocation3 + $0xa8] sm:$0xff] %v848
  %860 = vst [vmem:[#allocation3 + $0xb0] sm:$0xff] %v849
  %861 = vst.msk [vmem:[#allocation3 + $0xb8] sm:$0xff] %vm37, %v844
  %v862 = vld [vmem:[#allocation2] sm:$0xff]
  %v863 = vld [vmem:[#allocation2 + $0x8] sm:$0xff]
  %v864 = vld [vmem:[#allocation2 + $0x10] sm:$0xff]
  %v865 = vld [vmem:[#allocation2 + $0x18] sm:$0xff]
  %v866 = vld [vmem:[#allocation2 + $0x20] sm:$0xff]
  %v867 = vld [vmem:[#allocation2 + $0x28] sm:$0xff]
  %874 = vrot.lane.b32.xlu0 %v862, 109
  %v875 = vpop.permute.xlu0 %874
  %876 = vrot.lane.b32.xlu0 %v863, 109
  %v877 = vpop.permute.xlu0 %876
  %878 = vrot.lane.b32.xlu0 %v864, 109
  %v879 = vpop.permute.xlu0 %878
  %880 = vrot.lane.b32.xlu0 %v865, 109
  %v881 = vpop.permute.xlu0 %880
  %882 = vrot.lane.b32.xlu0 %v866, 109
  %v883 = vpop.permute.xlu0 %882
  %884 = vrot.lane.b32.xlu0 %v867, 109
  %v885 = vpop.permute.xlu0 %884
  %v886 = vsel %vm189, %v875, %v877
  %v887 = vsel %vm189, %v877, %v879
  %v888 = vsel %vm189, %v879, %v881
  %v889 = vsel %vm189, %v881, %v883
  %v890 = vsel %vm189, %v883, %v885
  %897 = vst [vmem:[#allocation3 + $0xc0] sm:$0xff] %v886
  %898 = vst [vmem:[#allocation3 + $0xc8] sm:$0xff] %v887
  %899 = vst [vmem:[#allocation3 + $0xd0] sm:$0xff] %v888
  %900 = vst [vmem:[#allocation3 + $0xd8] sm:$0xff] %v889
  %901 = vst [vmem:[#allocation3 + $0xe0] sm:$0xff] %v890
  %902 = vst.msk [vmem:[#allocation3 + $0xe8] sm:$0xff] %vm37, %v885
  %v903 = vld [vmem:[#allocation2] sm:$0xff]
  %v904 = vld [vmem:[#allocation2 + $0x8] sm:$0xff]
  %v905 = vld [vmem:[#allocation2 + $0x10] sm:$0xff]
  %v906 = vld [vmem:[#allocation2 + $0x18] sm:$0xff]
  %v907 = vld [vmem:[#allocation2 + $0x20] sm:$0xff]
  %v908 = vld [vmem:[#allocation2 + $0x28] sm:$0xff]
  %915 = vrot.lane.b32.xlu0 %v903, 108
  %v916 = vpop.permute.xlu0 %915
  %917 = vrot.lane.b32.xlu0 %v904, 108
  %v918 = vpop.permute.xlu0 %917
  %919 = vrot.lane.b32.xlu0 %v905, 108
  %v920 = vpop.permute.xlu0 %919
  %921 = vrot.lane.b32.xlu0 %v906, 108
  %v922 = vpop.permute.xlu0 %921
  %923 = vrot.lane.b32.xlu0 %v907, 108
  %v924 = vpop.permute.xlu0 %923
  %925 = vrot.lane.b32.xlu0 %v908, 108
  %v926 = vpop.permute.xlu0 %925
  %v927 = vsel %vm231, %v916, %v918
  %v928 = vsel %vm231, %v918, %v920
  %v929 = vsel %vm231, %v920, %v922
  %v930 = vsel %vm231, %v922, %v924
  %v931 = vsel %vm231, %v924, %v926
  %938 = vst [vmem:[#allocation3 + $0xf0] sm:$0xff] %v927
  %939 = vst [vmem:[#allocation3 + $0xf8] sm:$0xff] %v928
  %940 = vst [vmem:[#allocation3 + $0x100] sm:$0xff] %v929
  %941 = vst [vmem:[#allocation3 + $0x108] sm:$0xff] %v930
  %942 = vst [vmem:[#allocation3 + $0x110] sm:$0xff] %v931
  %943 = vst.msk [vmem:[#allocation3 + $0x118] sm:$0xff] %vm37, %v926
  %v944 = vld [vmem:[#allocation2] sm:$0xff]
  %v945 = vld [vmem:[#allocation2 + $0x8] sm:$0xff]
  %v946 = vld [vmem:[#allocation2 + $0x10] sm:$0xff]
  %v947 = vld [vmem:[#allocation2 + $0x18] sm:$0xff]
  %v948 = vld [vmem:[#allocation2 + $0x20] sm:$0xff]
  %v949 = vld [vmem:[#allocation2 + $0x28] sm:$0xff]
  %956 = vrot.lane.b32.xlu0 %v944, 92
  %v957 = vpop.permute.xlu0 %956
  %958 = vrot.lane.b32.xlu0 %v945, 92
  %v959 = vpop.permute.xlu0 %958
  %960 = vrot.lane.b32.xlu0 %v946, 92
  %v961 = vpop.permute.xlu0 %960
  %962 = vrot.lane.b32.xlu0 %v947, 92
  %v963 = vpop.permute.xlu0 %962
  %964 = vrot.lane.b32.xlu0 %v948, 92
  %v965 = vpop.permute.xlu0 %964
  %966 = vrot.lane.b32.xlu0 %v949, 92
  %v967 = vpop.permute.xlu0 %966
  %v968 = vsel %vm273, %v957, %v959
  %v969 = vsel %vm273, %v959, %v961
  %v970 = vsel %vm273, %v961, %v963
  %v971 = vsel %vm273, %v963, %v965
  %v972 = vsel %vm273, %v965, %v967
  %979 = vst [vmem:[#allocation3 + $0x120] sm:$0xff] %v968
  %980 = vst [vmem:[#allocation3 + $0x128] sm:$0xff] %v969
  %981 = vst [vmem:[#allocation3 + $0x130] sm:$0xff] %v970
  %982 = vst [vmem:[#allocation3 + $0x138] sm:$0xff] %v971
  %983 = vst [vmem:[#allocation3 + $0x140] sm:$0xff] %v972
  %984 = vst.msk [vmem:[#allocation3 + $0x148] sm:$0xff] %vm37, %v967
  %v985 = vld [vmem:[#allocation2] sm:$0xff]
  %v986 = vld [vmem:[#allocation2 + $0x8] sm:$0xff]
  %v987 = vld [vmem:[#allocation2 + $0x10] sm:$0xff]
  %v988 = vld [vmem:[#allocation2 + $0x18] sm:$0xff]
  %v989 = vld [vmem:[#allocation2 + $0x20] sm:$0xff]
  %v990 = vld [vmem:[#allocation2 + $0x28] sm:$0xff]
  %997 = vrot.lane.b32.xlu0 %v985, 91
  %v998 = vpop.permute.xlu0 %997
  %999 = vrot.lane.b32.xlu0 %v986, 91
  %v1000 = vpop.permute.xlu0 %999
  %1001 = vrot.lane.b32.xlu0 %v987, 91
  %v1002 = vpop.permute.xlu0 %1001
  %1003 = vrot.lane.b32.xlu0 %v988, 91
  %v1004 = vpop.permute.xlu0 %1003
  %1005 = vrot.lane.b32.xlu0 %v989, 91
  %v1006 = vpop.permute.xlu0 %1005
  %1007 = vrot.lane.b32.xlu0 %v990, 91
  %v1008 = vpop.permute.xlu0 %1007
  %v1009 = vsel %vm315, %v998, %v1000
  %v1010 = vsel %vm315, %v1000, %v1002
  %v1011 = vsel %vm315, %v1002, %v1004
  %v1012 = vsel %vm315, %v1004, %v1006
  %v1013 = vsel %vm315, %v1006, %v1008
  %1020 = vst [vmem:[#allocation3 + $0x150] sm:$0xff] %v1009
  %1021 = vst [vmem:[#allocation3 + $0x158] sm:$0xff] %v1010
  %1022 = vst [vmem:[#allocation3 + $0x160] sm:$0xff] %v1011
  %1023 = vst [vmem:[#allocation3 + $0x168] sm:$0xff] %v1012
  %1024 = vst [vmem:[#allocation3 + $0x170] sm:$0xff] %v1013
  %1025 = vst.msk [vmem:[#allocation3 + $0x178] sm:$0xff] %vm37, %v1008
  %v1026 = vld [vmem:[#allocation2] sm:$0xff]
  %v1027 = vld [vmem:[#allocation2 + $0x8] sm:$0xff]
  %v1028 = vld [vmem:[#allocation2 + $0x10] sm:$0xff]
  %v1029 = vld [vmem:[#allocation2 + $0x18] sm:$0xff]
  %v1030 = vld [vmem:[#allocation2 + $0x20] sm:$0xff]
  %v1031 = vld [vmem:[#allocation2 + $0x28] sm:$0xff]
  %1038 = vrot.lane.b32.xlu0 %v1026, 90
  %v1039 = vpop.permute.xlu0 %1038
  %1040 = vrot.lane.b32.xlu0 %v1027, 90
  %v1041 = vpop.permute.xlu0 %1040
  %1042 = vrot.lane.b32.xlu0 %v1028, 90
  %v1043 = vpop.permute.xlu0 %1042
  %1044 = vrot.lane.b32.xlu0 %v1029, 90
  %v1045 = vpop.permute.xlu0 %1044
  %1046 = vrot.lane.b32.xlu0 %v1030, 90
  %v1047 = vpop.permute.xlu0 %1046
  %1048 = vrot.lane.b32.xlu0 %v1031, 90
  %v1049 = vpop.permute.xlu0 %1048
  %v1050 = vsel %vm357, %v1039, %v1041
  %v1051 = vsel %vm357, %v1041, %v1043
  %v1052 = vsel %vm357, %v1043, %v1045
  %v1053 = vsel %vm357, %v1045, %v1047
  %v1054 = vsel %vm357, %v1047, %v1049
  %1061 = vst [vmem:[#allocation3 + $0x180] sm:$0xff] %v1050
  %1062 = vst [vmem:[#allocation3 + $0x188] sm:$0xff] %v1051
  %1063 = vst [vmem:[#allocation3 + $0x190] sm:$0xff] %v1052
  %1064 = vst [vmem:[#allocation3 + $0x198] sm:$0xff] %v1053
  %1065 = vst [vmem:[#allocation3 + $0x1a0] sm:$0xff] %v1054
  %1066 = vst.msk [vmem:[#allocation3 + $0x1a8] sm:$0xff] %vm37, %v1049
  %s1067 = scalar_lea.vmem %s1, 8
  %v1068 = vld [vmem:[%s1067] sm:$0xff]
  %v1069 = vld [vmem:[#allocation3] sm:$0xff]
  %v1070 = vld [vmem:[#allocation3 + $0x8] sm:$0xff]
  %v1071 = vld [vmem:[#allocation3 + $0x10] sm:$0xff]
  %v1072 = vld [vmem:[#allocation3 + $0x18] sm:$0xff]
  %v1073 = vld [vmem:[#allocation3 + $0x20] sm:$0xff]
  %v1074 = vld [vmem:[#allocation3 + $0x28] sm:$0xff]
  %v1075 = vld [vmem:[#allocation3 + $0x30] sm:$0xff]
  %v1076 = vld [vmem:[#allocation3 + $0x38] sm:$0xff]
  %v1077 = vld [vmem:[#allocation3 + $0x40] sm:$0xff]
  %v1078 = vld [vmem:[#allocation3 + $0x48] sm:$0xff]
  %v1079 = vld [vmem:[#allocation3 + $0x50] sm:$0xff]
  %v1080 = vld [vmem:[#allocation3 + $0x58] sm:$0xff]
  %v1081 = vld [vmem:[#allocation3 + $0x60] sm:$0xff]
  %v1082 = vld [vmem:[#allocation3 + $0x68] sm:$0xff]
  %v1083 = vld [vmem:[#allocation3 + $0x70] sm:$0xff]
  %v1084 = vld [vmem:[#allocation3 + $0x78] sm:$0xff]
  %v1085 = vld [vmem:[#allocation3 + $0x80] sm:$0xff]
  %v1086 = vld [vmem:[#allocation3 + $0x88] sm:$0xff]
  %v1087 = vld [vmem:[#allocation3 + $0x90] sm:$0xff]
  %v1088 = vld [vmem:[#allocation3 + $0x98] sm:$0xff]
  %v1089 = vld [vmem:[#allocation3 + $0xa0] sm:$0xff]
  %v1090 = vld [vmem:[#allocation3 + $0xa8] sm:$0xff]
  %v1091 = vld [vmem:[#allocation3 + $0xb0] sm:$0xff]
  %v1092 = vld [vmem:[#allocation3 + $0xb8] sm:$0xff]
  %v1093 = vld [vmem:[#allocation3 + $0xc0] sm:$0xff]
  %v1094 = vld [vmem:[#allocation3 + $0xc8] sm:$0xff]
  %v1095 = vld [vmem:[#allocation3 + $0xd0] sm:$0xff]
  %v1096 = vld [vmem:[#allocation3 + $0xd8] sm:$0xff]
  %v1097 = vld [vmem:[#allocation3 + $0xe0] sm:$0xff]
  %v1098 = vld [vmem:[#allocation3 + $0xe8] sm:$0xff]
  %v1099 = vld [vmem:[#allocation3 + $0xf0] sm:$0xff]
  %v1100 = vld [vmem:[#allocation3 + $0xf8] sm:$0xff]
  %v1101 = vld [vmem:[#allocation3 + $0x100] sm:$0xff]
  %v1102 = vld [vmem:[#allocation3 + $0x108] sm:$0xff]
  %v1103 = vld [vmem:[#allocation3 + $0x110] sm:$0xff]
  %v1104 = vld [vmem:[#allocation3 + $0x118] sm:$0xff]
  %v1105 = vld [vmem:[#allocation3 + $0x120] sm:$0xff]
  %v1106 = vld [vmem:[#allocation3 + $0x128] sm:$0xff]
  %v1107 = vld [vmem:[#allocation3 + $0x130] sm:$0xff]
  %v1108 = vld [vmem:[#allocation3 + $0x138] sm:$0xff]
  %v1109 = vld [vmem:[#allocation3 + $0x140] sm:$0xff]
  %v1110 = vld [vmem:[#allocation3 + $0x148] sm:$0xff]
  %v1111 = vld [vmem:[#allocation3 + $0x150] sm:$0xff]
  %v1112 = vld [vmem:[#allocation3 + $0x158] sm:$0xff]
  %v1113 = vld [vmem:[#allocation3 + $0x160] sm:$0xff]
  %v1114 = vld [vmem:[#allocation3 + $0x168] sm:$0xff]
  %v1115 = vld [vmem:[#allocation3 + $0x170] sm:$0xff]
  %v1116 = vld [vmem:[#allocation3 + $0x178] sm:$0xff]
  %v1117 = vld [vmem:[#allocation3 + $0x180] sm:$0xff]
  %v1118 = vld [vmem:[#allocation3 + $0x188] sm:$0xff]
  %v1119 = vld [vmem:[#allocation3 + $0x190] sm:$0xff]
  %v1120 = vld [vmem:[#allocation3 + $0x198] sm:$0xff]
  %v1121 = vld [vmem:[#allocation3 + $0x1a0] sm:$0xff]
  %v1122 = vld [vmem:[#allocation3 + $0x1a8] sm:$0xff]
  %v1124 = vsel %vm430, %v1068, 0
  %1126 = vmatprep.subr.mxu0 0.0
  %1127 = vmatpush1.msra.mxu0 0.0
  %1128 = vmatprep.subr.mxu0 0.0
  %1129 = vmatpush1.msra.mxu0 0.0
  %1130 = vmatprep.subr.mxu0 0.0
  %1131 = vmatpush1.msra.mxu0 0.0
  %1132 = vmatprep.subr.mxu0 0.0
  %1133 = vmatpush1.msra.mxu0 0.0
  %1134 = vmatprep.subr.mxu0 0.0
  %1135 = vmatpush1.msra.mxu0 0.0
  %1136 = vmatprep.subr.mxu0 0.0
  %1137 = vmatpush1.msra.mxu0 0.0
  %1138 = vmatprep.subr.mxu0 0.0
  %1139 = vmatpush1.msra.mxu0 0.0
  %1140 = vmatprep.subr.mxu0 %v1118
  %1141 = vmatpush1.msra.mxu0 %v1117
  %1142 = vmatprep.subr.mxu0 %v1112
  %1143 = vmatpush1.msra.mxu0 %v1111
  %1144 = vmatprep.subr.mxu0 %v1106
  %1145 = vmatpush1.msra.mxu0 %v1105
  %1146 = vmatprep.subr.mxu0 %v1100
  %1147 = vmatpush1.msra.mxu0 %v1099
  %1148 = vmatprep.subr.mxu0 %v1094
  %1149 = vmatpush1.msra.mxu0 %v1093
  %1150 = vmatprep.subr.mxu0 %v1088
  %1151 = vmatpush1.msra.mxu0 %v1087
  %1152 = vmatprep.subr.mxu0 %v1082
  %1153 = vmatpush1.msra.mxu0 %v1081
  %1154 = vmatprep.subr.mxu0 %v1076
  %1155 = vmatpush1.msra.mxu0 %v1075
  %1156 = vmatprep.subr.mxu0 %v1070
  %1157 = vmatpush1.msra.mxu0 %v1069
  %1158 = vmatprep.subr.mxu0 0.0
  %1159 = vmatpush2.msra.mxu0 0.0
  %1160 = vmatprep.subr.mxu0 0.0
  %1161 = vmatpush2.msra.mxu0 0.0
  %1162 = vmatprep.subr.mxu0 0.0
  %1163 = vmatpush2.msra.mxu0 0.0
  %1164 = vmatprep.subr.mxu0 0.0
  %1165 = vmatpush2.msra.mxu0 0.0
  %1166 = vmatprep.subr.mxu0 0.0
  %1167 = vmatpush2.msra.mxu0 0.0
  %1168 = vmatprep.subr.mxu0 0.0
  %1169 = vmatpush2.msra.mxu0 0.0
  %1170 = vmatprep.subr.mxu0 0.0
  %1171 = vmatpush2.msra.mxu0 0.0
  %1172 = vmatprep.subr.mxu0 0.0
  %1173 = vmatpush2.msra.mxu0 0.0
  %1174 = vmatprep.subr.mxu0 0.0
  %1175 = vmatpush2.msra.mxu0 0.0
  %1176 = vmatprep.subr.mxu0 0.0
  %1177 = vmatpush2.msra.mxu0 0.0
  %1178 = vmatprep.subr.mxu0 0.0
  %1179 = vmatpush2.msra.mxu0 0.0
  %1180 = vmatprep.subr.mxu0 0.0
  %1181 = vmatpush2.msra.mxu0 0.0
  %1182 = vmatprep.subr.mxu0 0.0
  %1183 = vmatpush2.msra.mxu0 0.0
  %1184 = vmatprep.subr.mxu0 0.0
  %1185 = vmatpush2.msra.mxu0 0.0
  %1186 = vmatprep.subr.mxu0 0.0
  %1187 = vmatpush2.msra.mxu0 0.0
  %1188 = vmatprep.subr.mxu0 0.0
  %1189 = vmatpush2.msra.mxu0 0.0
  %1190 = vmatprep.mubr.f32.mxu0 0.0
  %1191 = vmatmul.mubr.f32.gmra.mxu0 %v1124
  %v1192 = vpop.f32.mrf.mxu0
  %v1193 = vadd.f32 0.0, %v1192
  %v1194 = vpop.f32.mrf.mxu0
  %v1195 = vadd.f32 0.0, %v1194
  %1196 = vdwg.mxu0
  %1197 = vmatprep.subr.mxu0 0.0
  %1198 = vmatpush1.msra.mxu0 0.0
  %1199 = vmatprep.subr.mxu0 0.0
  %1200 = vmatpush1.msra.mxu0 0.0
  %1201 = vmatprep.subr.mxu0 0.0
  %1202 = vmatpush1.msra.mxu0 0.0
  %1203 = vmatprep.subr.mxu0 0.0
  %1204 = vmatpush1.msra.mxu0 0.0
  %1205 = vmatprep.subr.mxu0 0.0
  %1206 = vmatpush1.msra.mxu0 0.0
  %1207 = vmatprep.subr.mxu0 0.0
  %1208 = vmatpush1.msra.mxu0 0.0
  %1209 = vmatprep.subr.mxu0 0.0
  %1210 = vmatpush1.msra.mxu0 0.0
  %1211 = vmatprep.subr.mxu0 %v1120
  %1212 = vmatpush1.msra.mxu0 %v1119
  %1213 = vmatprep.subr.mxu0 %v1114
  %1214 = vmatpush1.msra.mxu0 %v1113
  %1215 = vmatprep.subr.mxu0 %v1108
  %1216 = vmatpush1.msra.mxu0 %v1107
  %1217 = vmatprep.subr.mxu0 %v1102
  %1218 = vmatpush1.msra.mxu0 %v1101
  %1219 = vmatprep.subr.mxu0 %v1096
  %1220 = vmatpush1.msra.mxu0 %v1095
  %1221 = vmatprep.subr.mxu0 %v1090
  %1222 = vmatpush1.msra.mxu0 %v1089
  %1223 = vmatprep.subr.mxu0 %v1084
  %1224 = vmatpush1.msra.mxu0 %v1083
  %1225 = vmatprep.subr.mxu0 %v1078
  %1226 = vmatpush1.msra.mxu0 %v1077
  %1227 = vmatprep.subr.mxu0 %v1072
  %1228 = vmatpush1.msra.mxu0 %v1071
  %1229 = vmatprep.subr.mxu0 0.0
  %1230 = vmatpush2.msra.mxu0 0.0
  %1231 = vmatprep.subr.mxu0 0.0
  %1232 = vmatpush2.msra.mxu0 0.0
  %1233 = vmatprep.subr.mxu0 0.0
  %1234 = vmatpush2.msra.mxu0 0.0
  %1235 = vmatprep.subr.mxu0 0.0
  %1236 = vmatpush2.msra.mxu0 0.0
  %1237 = vmatprep.subr.mxu0 0.0
  %1238 = vmatpush2.msra.mxu0 0.0
  %1239 = vmatprep.subr.mxu0 0.0
  %1240 = vmatpush2.msra.mxu0 0.0
  %1241 = vmatprep.subr.mxu0 0.0
  %1242 = vmatpush2.msra.mxu0 0.0
  %1243 = vmatprep.subr.mxu0 0.0
  %1244 = vmatpush2.msra.mxu0 0.0
  %1245 = vmatprep.subr.mxu0 0.0
  %1246 = vmatpush2.msra.mxu0 0.0
  %1247 = vmatprep.subr.mxu0 0.0
  %1248 = vmatpush2.msra.mxu0 0.0
  %1249 = vmatprep.subr.mxu0 0.0
  %1250 = vmatpush2.msra.mxu0 0.0
  %1251 = vmatprep.subr.mxu0 0.0
  %1252 = vmatpush2.msra.mxu0 0.0
  %1253 = vmatprep.subr.mxu0 0.0
  %1254 = vmatpush2.msra.mxu0 0.0
  %1255 = vmatprep.subr.mxu0 0.0
  %1256 = vmatpush2.msra.mxu0 0.0
  %1257 = vmatprep.subr.mxu0 0.0
  %1258 = vmatpush2.msra.mxu0 0.0
  %1259 = vmatprep.subr.mxu0 0.0
  %1260 = vmatpush2.msra.mxu0 0.0
  %1261 = vmatprep.mubr.f32.mxu0 0.0
  %1262 = vmatmul.mubr.f32.gmra.mxu0 %v1124
  %v1263 = vpop.f32.mrf.mxu0
  %v1264 = vadd.f32 0.0, %v1263
  %v1265 = vpop.f32.mrf.mxu0
  %v1266 = vadd.f32 0.0, %v1265
  %1267 = vdwg.mxu0
  %1268 = vmatprep.subr.mxu0 0.0
  %1269 = vmatpush1.msra.mxu0 0.0
  %1270 = vmatprep.subr.mxu0 0.0
  %1271 = vmatpush1.msra.mxu0 0.0
  %1272 = vmatprep.subr.mxu0 0.0
  %1273 = vmatpush1.msra.mxu0 0.0
  %1274 = vmatprep.subr.mxu0 0.0
  %1275 = vmatpush1.msra.mxu0 0.0
  %1276 = vmatprep.subr.mxu0 0.0
  %1277 = vmatpush1.msra.mxu0 0.0
  %1278 = vmatprep.subr.mxu0 0.0
  %1279 = vmatpush1.msra.mxu0 0.0
  %1280 = vmatprep.subr.mxu0 0.0
  %1281 = vmatpush1.msra.mxu0 0.0
  %1282 = vmatprep.subr.mxu0 %v1122
  %1283 = vmatpush1.msra.mxu0 %v1121
  %1284 = vmatprep.subr.mxu0 %v1116
  %1285 = vmatpush1.msra.mxu0 %v1115
  %1286 = vmatprep.subr.mxu0 %v1110
  %1287 = vmatpush1.msra.mxu0 %v1109
  %1288 = vmatprep.subr.mxu0 %v1104
  %1289 = vmatpush1.msra.mxu0 %v1103
  %1290 = vmatprep.subr.mxu0 %v1098
  %1291 = vmatpush1.msra.mxu0 %v1097
  %1292 = vmatprep.subr.mxu0 %v1092
  %1293 = vmatpush1.msra.mxu0 %v1091
  %1294 = vmatprep.subr.mxu0 %v1086
  %1295 = vmatpush1.msra.mxu0 %v1085
  %1296 = vmatprep.subr.mxu0 %v1080
  %1297 = vmatpush1.msra.mxu0 %v1079
  %1298 = vmatprep.subr.mxu0 %v1074
  %1299 = vmatpush1.msra.mxu0 %v1073
  %1300 = vmatprep.subr.mxu0 0.0
  %1301 = vmatpush2.msra.mxu0 0.0
  %1302 = vmatprep.subr.mxu0 0.0
  %1303 = vmatpush2.msra.mxu0 0.0
  %1304 = vmatprep.subr.mxu0 0.0
  %1305 = vmatpush2.msra.mxu0 0.0
  %1306 = vmatprep.subr.mxu0 0.0
  %1307 = vmatpush2.msra.mxu0 0.0
  %1308 = vmatprep.subr.mxu0 0.0
  %1309 = vmatpush2.msra.mxu0 0.0
  %1310 = vmatprep.subr.mxu0 0.0
  %1311 = vmatpush2.msra.mxu0 0.0
  %1312 = vmatprep.subr.mxu0 0.0
  %1313 = vmatpush2.msra.mxu0 0.0
  %1314 = vmatprep.subr.mxu0 0.0
  %1315 = vmatpush2.msra.mxu0 0.0
  %1316 = vmatprep.subr.mxu0 0.0
  %1317 = vmatpush2.msra.mxu0 0.0
  %1318 = vmatprep.subr.mxu0 0.0
  %1319 = vmatpush2.msra.mxu0 0.0
  %1320 = vmatprep.subr.mxu0 0.0
  %1321 = vmatpush2.msra.mxu0 0.0
  %1322 = vmatprep.subr.mxu0 0.0
  %1323 = vmatpush2.msra.mxu0 0.0
  %1324 = vmatprep.subr.mxu0 0.0
  %1325 = vmatpush2.msra.mxu0 0.0
  %1326 = vmatprep.subr.mxu0 0.0
  %1327 = vmatpush2.msra.mxu0 0.0
  %1328 = vmatprep.subr.mxu0 0.0
  %1329 = vmatpush2.msra.mxu0 0.0
  %1330 = vmatprep.subr.mxu0 0.0
  %1331 = vmatpush2.msra.mxu0 0.0
  %1332 = vmatprep.mubr.f32.mxu0 0.0
  %1333 = vmatmul.mubr.f32.gmra.mxu0 %v1124
  %v1334 = vpop.f32.mrf.mxu0
  %v1335 = vadd.f32 0.0, %v1334
  %v1336 = vpop.f32.mrf.mxu0
  %v1337 = vadd.f32 0.0, %v1336
  %1338 = vdwg.mxu0
  %v1339 = vmax.f32 %v1193, 0.0
  %v1340 = vmax.f32 %v1195, 0.0
  %v1341 = vmax.f32 %v1264, 0.0
  %v1342 = vmax.f32 %v1266, 0.0
  %v1343 = vmax.f32 %v1335, 0.0
  %v1344 = vmax.f32 %v1337, 0.0
  %v1345 = vld [vmem:[%s2] sm:$0xff]
  %v1347 = vsel %vm37, %v1345, 0
  %1349 = vmatprep.subr.mxu0 0.0
  %1350 = vmatpush1.msra.mxu0 0.0
  %1351 = vmatprep.subr.mxu0 0.0
  %1352 = vmatpush1.msra.mxu0 0.0
  %1353 = vmatprep.subr.mxu0 0.0
  %1354 = vmatpush1.msra.mxu0 0.0
  %1355 = vmatprep.subr.mxu0 0.0
  %1356 = vmatpush1.msra.mxu0 0.0
  %1357 = vmatprep.subr.mxu0 0.0
  %1358 = vmatpush1.msra.mxu0 0.0
  %1359 = vmatprep.subr.mxu0 0.0
  %1360 = vmatpush1.msra.mxu0 0.0
  %1361 = vmatprep.subr.mxu0 0.0
  %1362 = vmatpush1.msra.mxu0 0.0
  %1363 = vmatprep.subr.mxu0 0.0
  %1364 = vmatpush1.msra.mxu0 0.0
  %1365 = vmatprep.subr.mxu0 0.0
  %1366 = vmatpush1.msra.mxu0 0.0
  %1367 = vmatprep.subr.mxu0 0.0
  %1368 = vmatpush1.msra.mxu0 0.0
  %1369 = vmatprep.subr.mxu0 0.0
  %1370 = vmatpush1.msra.mxu0 0.0
  %1371 = vmatprep.subr.mxu0 0.0
  %1372 = vmatpush1.msra.mxu0 0.0
  %1373 = vmatprep.subr.mxu0 0.0
  %1374 = vmatpush1.msra.mxu0 0.0
  %1375 = vmatprep.subr.mxu0 0.0
  %1376 = vmatpush1.msra.mxu0 0.0
  %1377 = vmatprep.subr.mxu0 0.0
  %1378 = vmatpush1.msra.mxu0 0.0
  %1379 = vmatprep.subr.mxu0 %v1340
  %1380 = vmatpush1.msra.mxu0 %v1339
  %1381 = vmatprep.subr.mxu0 0.0
  %1382 = vmatpush2.msra.mxu0 0.0
  %1383 = vmatprep.subr.mxu0 0.0
  %1384 = vmatpush2.msra.mxu0 0.0
  %1385 = vmatprep.subr.mxu0 0.0
  %1386 = vmatpush2.msra.mxu0 0.0
  %1387 = vmatprep.subr.mxu0 0.0
  %1388 = vmatpush2.msra.mxu0 0.0
  %1389 = vmatprep.subr.mxu0 0.0
  %1390 = vmatpush2.msra.mxu0 0.0
  %1391 = vmatprep.subr.mxu0 0.0
  %1392 = vmatpush2.msra.mxu0 0.0
  %1393 = vmatprep.subr.mxu0 0.0
  %1394 = vmatpush2.msra.mxu0 0.0
  %1395 = vmatprep.subr.mxu0 0.0
  %1396 = vmatpush2.msra.mxu0 0.0
  %1397 = vmatprep.subr.mxu0 0.0
  %1398 = vmatpush2.msra.mxu0 0.0
  %1399 = vmatprep.subr.mxu0 0.0
  %1400 = vmatpush2.msra.mxu0 0.0
  %1401 = vmatprep.subr.mxu0 0.0
  %1402 = vmatpush2.msra.mxu0 0.0
  %1403 = vmatprep.subr.mxu0 0.0
  %1404 = vmatpush2.msra.mxu0 0.0
  %1405 = vmatprep.subr.mxu0 0.0
  %1406 = vmatpush2.msra.mxu0 0.0
  %1407 = vmatprep.subr.mxu0 0.0
  %1408 = vmatpush2.msra.mxu0 0.0
  %1409 = vmatprep.subr.mxu0 0.0
  %1410 = vmatpush2.msra.mxu0 0.0
  %1411 = vmatprep.subr.mxu0 0.0
  %1412 = vmatpush2.msra.mxu0 0.0
  %1413 = vmatprep.mubr.f32.mxu0 0.0
  %1414 = vmatmul.mubr.f32.gmra.mxu0 %v1347
  %v1415 = vpop.f32.mrf.mxu0
  %v1416 = vadd.f32 0.0, %v1415
  %v1417 = vpop.f32.mrf.mxu0
  %v1418 = vadd.f32 0.0, %v1417
  %1419 = vdwg.mxu0
  %1420 = vmatprep.subr.mxu0 0.0
  %1421 = vmatpush1.msra.mxu0 0.0
  %1422 = vmatprep.subr.mxu0 0.0
  %1423 = vmatpush1.msra.mxu0 0.0
  %1424 = vmatprep.subr.mxu0 0.0
  %1425 = vmatpush1.msra.mxu0 0.0
  %1426 = vmatprep.subr.mxu0 0.0
  %1427 = vmatpush1.msra.mxu0 0.0
  %1428 = vmatprep.subr.mxu0 0.0
  %1429 = vmatpush1.msra.mxu0 0.0
  %1430 = vmatprep.subr.mxu0 0.0
  %1431 = vmatpush1.msra.mxu0 0.0
  %1432 = vmatprep.subr.mxu0 0.0
  %1433 = vmatpush1.msra.mxu0 0.0
  %1434 = vmatprep.subr.mxu0 0.0
  %1435 = vmatpush1.msra.mxu0 0.0
  %1436 = vmatprep.subr.mxu0 0.0
  %1437 = vmatpush1.msra.mxu0 0.0
  %1438 = vmatprep.subr.mxu0 0.0
  %1439 = vmatpush1.msra.mxu0 0.0
  %1440 = vmatprep.subr.mxu0 0.0
  %1441 = vmatpush1.msra.mxu0 0.0
  %1442 = vmatprep.subr.mxu0 0.0
  %1443 = vmatpush1.msra.mxu0 0.0
  %1444 = vmatprep.subr.mxu0 0.0
  %1445 = vmatpush1.msra.mxu0 0.0
  %1446 = vmatprep.subr.mxu0 0.0
  %1447 = vmatpush1.msra.mxu0 0.0
  %1448 = vmatprep.subr.mxu0 0.0
  %1449 = vmatpush1.msra.mxu0 0.0
  %1450 = vmatprep.subr.mxu0 %v1342
  %1451 = vmatpush1.msra.mxu0 %v1341
  %1452 = vmatprep.subr.mxu0 0.0
  %1453 = vmatpush2.msra.mxu0 0.0
  %1454 = vmatprep.subr.mxu0 0.0
  %1455 = vmatpush2.msra.mxu0 0.0
  %1456 = vmatprep.subr.mxu0 0.0
  %1457 = vmatpush2.msra.mxu0 0.0
  %1458 = vmatprep.subr.mxu0 0.0
  %1459 = vmatpush2.msra.mxu0 0.0
  %1460 = vmatprep.subr.mxu0 0.0
  %1461 = vmatpush2.msra.mxu0 0.0
  %1462 = vmatprep.subr.mxu0 0.0
  %1463 = vmatpush2.msra.mxu0 0.0
  %1464 = vmatprep.subr.mxu0 0.0
  %1465 = vmatpush2.msra.mxu0 0.0
  %1466 = vmatprep.subr.mxu0 0.0
  %1467 = vmatpush2.msra.mxu0 0.0
  %1468 = vmatprep.subr.mxu0 0.0
  %1469 = vmatpush2.msra.mxu0 0.0
  %1470 = vmatprep.subr.mxu0 0.0
  %1471 = vmatpush2.msra.mxu0 0.0
  %1472 = vmatprep.subr.mxu0 0.0
  %1473 = vmatpush2.msra.mxu0 0.0
  %1474 = vmatprep.subr.mxu0 0.0
  %1475 = vmatpush2.msra.mxu0 0.0
  %1476 = vmatprep.subr.mxu0 0.0
  %1477 = vmatpush2.msra.mxu0 0.0
  %1478 = vmatprep.subr.mxu0 0.0
  %1479 = vmatpush2.msra.mxu0 0.0
  %1480 = vmatprep.subr.mxu0 0.0
  %1481 = vmatpush2.msra.mxu0 0.0
  %1482 = vmatprep.subr.mxu0 0.0
  %1483 = vmatpush2.msra.mxu0 0.0
  %1484 = vmatprep.mubr.f32.mxu0 0.0
  %1485 = vmatmul.mubr.f32.gmra.mxu0 %v1347
  %v1486 = vpop.f32.mrf.mxu0
  %v1487 = vadd.f32 0.0, %v1486
  %v1488 = vpop.f32.mrf.mxu0
  %v1489 = vadd.f32 0.0, %v1488
  %1490 = vdwg.mxu0
  %1491 = vmatprep.subr.mxu0 0.0
  %1492 = vmatpush1.msra.mxu0 0.0
  %1493 = vmatprep.subr.mxu0 0.0
  %1494 = vmatpush1.msra.mxu0 0.0
  %1495 = vmatprep.subr.mxu0 0.0
  %1496 = vmatpush1.msra.mxu0 0.0
  %1497 = vmatprep.subr.mxu0 0.0
  %1498 = vmatpush1.msra.mxu0 0.0
  %1499 = vmatprep.subr.mxu0 0.0
  %1500 = vmatpush1.msra.mxu0 0.0
  %1501 = vmatprep.subr.mxu0 0.0
  %1502 = vmatpush1.msra.mxu0 0.0
  %1503 = vmatprep.subr.mxu0 0.0
  %1504 = vmatpush1.msra.mxu0 0.0
  %1505 = vmatprep.subr.mxu0 0.0
  %1506 = vmatpush1.msra.mxu0 0.0
  %1507 = vmatprep.subr.mxu0 0.0
  %1508 = vmatpush1.msra.mxu0 0.0
  %1509 = vmatprep.subr.mxu0 0.0
  %1510 = vmatpush1.msra.mxu0 0.0
  %1511 = vmatprep.subr.mxu0 0.0
  %1512 = vmatpush1.msra.mxu0 0.0
  %1513 = vmatprep.subr.mxu0 0.0
  %1514 = vmatpush1.msra.mxu0 0.0
  %1515 = vmatprep.subr.mxu0 0.0
  %1516 = vmatpush1.msra.mxu0 0.0
  %1517 = vmatprep.subr.mxu0 0.0
  %1518 = vmatpush1.msra.mxu0 0.0
  %1519 = vmatprep.subr.mxu0 0.0
  %1520 = vmatpush1.msra.mxu0 0.0
  %1521 = vmatprep.subr.mxu0 %v1344
  %1522 = vmatpush1.msra.mxu0 %v1343
  %1523 = vmatprep.subr.mxu0 0.0
  %1524 = vmatpush2.msra.mxu0 0.0
  %1525 = vmatprep.subr.mxu0 0.0
  %1526 = vmatpush2.msra.mxu0 0.0
  %1527 = vmatprep.subr.mxu0 0.0
  %1528 = vmatpush2.msra.mxu0 0.0
  %1529 = vmatprep.subr.mxu0 0.0
  %1530 = vmatpush2.msra.mxu0 0.0
  %1531 = vmatprep.subr.mxu0 0.0
  %1532 = vmatpush2.msra.mxu0 0.0
  %1533 = vmatprep.subr.mxu0 0.0
  %1534 = vmatpush2.msra.mxu0 0.0
  %1535 = vmatprep.subr.mxu0 0.0
  %1536 = vmatpush2.msra.mxu0 0.0
  %1537 = vmatprep.subr.mxu0 0.0
  %1538 = vmatpush2.msra.mxu0 0.0
  %1539 = vmatprep.subr.mxu0 0.0
  %1540 = vmatpush2.msra.mxu0 0.0
  %1541 = vmatprep.subr.mxu0 0.0
  %1542 = vmatpush2.msra.mxu0 0.0
  %1543 = vmatprep.subr.mxu0 0.0
  %1544 = vmatpush2.msra.mxu0 0.0
  %1545 = vmatprep.subr.mxu0 0.0
  %1546 = vmatpush2.msra.mxu0 0.0
  %1547 = vmatprep.subr.mxu0 0.0
  %1548 = vmatpush2.msra.mxu0 0.0
  %1549 = vmatprep.subr.mxu0 0.0
  %1550 = vmatpush2.msra.mxu0 0.0
  %1551 = vmatprep.subr.mxu0 0.0
  %1552 = vmatpush2.msra.mxu0 0.0
  %1553 = vmatprep.subr.mxu0 0.0
  %1554 = vmatpush2.msra.mxu0 0.0
  %1555 = vmatprep.mubr.f32.mxu0 0.0
  %1556 = vmatmul.mubr.f32.gmra.mxu0 %v1347
  %v1557 = vpop.f32.mrf.mxu0
  %v1558 = vadd.f32 0.0, %v1557
  %v1559 = vpop.f32.mrf.mxu0
  %v1560 = vadd.f32 0.0, %v1559
  %1561 = vdwg.mxu0
  %s1562 = sld [smem:[#allocation4]]
  %v1563 = vstv %s1562
  %v1564 = vadd.f32 %v1416, %v1563
  %v1565 = vadd.f32 %v1418, %v1563
  %v1566 = vadd.f32 %v1487, %v1563
  %v1567 = vadd.f32 %v1489, %v1563
  %v1568 = vadd.f32 %v1558, %v1563
  %v1569 = vadd.f32 %v1560, %v1563
  %v1576 = vcombine.low %v1564, %v1565
  %v1577 = vcombine.low %v1566, %v1567
  %v1578 = vcombine.low %v1568, %v1569
  %v1580 = vunpack.c.l.s4 1966171168
  %v1581 = vunpack.c.0.s8 %v1580
  %v1582 = vlaneseq
  %v1583 = vshrl.u32 %v1582, 7
  %v1584 = vsub.s32 %v1581, %v1583
  %v1585 = vrot.slane %v1576, %v1584
  %v1587 = vunpack.c.l.s4 1966171168
  %v1588 = vunpack.c.0.s8 %v1587
  %v1589 = vlaneseq
  %v1590 = vshrl.u32 %v1589, 7
  %v1591 = vsub.s32 %v1588, %v1590
  %v1592 = vrot.slane %v1577, %v1591
  %v1594 = vunpack.c.l.s4 1966171168
  %v1595 = vunpack.c.0.s8 %v1594
  %v1596 = vlaneseq
  %v1597 = vshrl.u32 %v1596, 7
  %v1598 = vsub.s32 %v1595, %v1597
  %v1599 = vrot.slane %v1578, %v1598
  %v1600 = vcombine.low %v1585, %v1592
  %v1602 = vunpack.c.l.s4 1966171168
  %v1603 = vunpack.c.0.s8 %v1602
  %v1604 = vlaneseq
  %v1605 = vshrl.u32 %v1604, 7
  %v1606 = vsub.s32 %v1603, %v1605
  %v1607 = vrot.slane %v1600, %v1606
  %v1609 = vunpack.c.l.s4 1966171168
  %v1610 = vunpack.c.0.s8 %v1609
  %v1611 = vlaneseq
  %v1612 = vshrl.u32 %v1611, 7
  %v1613 = vsub.s32 %v1610, %v1612
  %v1614 = vrot.slane %v1599, %v1613
  %v1615 = vcombine.low %v1607, %v1614
  %v1617 = vlaneseq
  %vm1618 = vcmp.ge.s32.totalorder %v1617, 0
  %vm1619 = vcmp.lt.s32.totalorder %v1617, 648
  %vm1620 = vmand %vm1618, %vm1619
  %1621 = vst.msk [vmem:[%s5] sm:$0x3f] %vm1620, %v1615
  // Predicated region
  $region22: #{cnn_forward.1} parent=0 // pred_check
    _
  $region23: #{cnn_forward.1} parent=0 // pred_check_branch
    %1623 = sbr.rel (0) target = $region25
  $region24: #{cnn_forward.1} parent=0 // pred_region
    _
  $region25: #{cnn_forward.1} parent=0 // pred_fallthru
    _
  // Predicated region
  $region26: #{cnn_forward.1} parent=0 // pred_check
    _
  $region27: #{cnn_forward.1} parent=0 // pred_check_branch
    %1625 = sbr.rel (0) target = $region29
  $region28: #{cnn_forward.1} parent=0 // pred_region
    _
  $region29: #{cnn_forward.1} parent=0 // pred_fallthru
    _

</llo_original>
